<compile_context>
chip_gen: v7x
topology: tpu7x:2x2x1
jax: 0.10.0
libtpu: 0.0.40
codegen_flags: <defaults>
</compile_context>

<pallas_src>
import jax
import jax.numpy as jnp
from jax import lax
from jax.experimental import pallas as pl
from jax.experimental.pallas import tpu as pltpu

K = 3      # kernel_size
PAD = 1    # padding
EPS = 1e-5 # BatchNorm2d default eps


def _bn_train(acc, gamma, beta, inv_n):
    """One-pass training-mode BatchNorm over the lane (N*H*W) axis, biased variance."""
    s = jnp.sum(acc, axis=1, keepdims=True)
    ss = jnp.sum(acc * acc, axis=1, keepdims=True)
    mean = s * inv_n
    var = ss * inv_n - mean * mean
    return (acc - mean) * lax.rsqrt(var + EPS) * gamma + beta


def _make_kernel(N, H, W, Cin, Cmid, Cout):
    NHW = N * H * W
    inv_n = 1.0 / float(NHW)
    taps = [(dy, dx) for dy in range(K) for dx in range(K)]   # row-major tap order

    def kernel(x_ref, w1t_ref, w2t_ref, m_ref,
               g1_ref, b1_ref, g2_ref, b2_ref,
               o_ref, p1_ref, p2_ref):
        xv = x_ref[...]                                       # (Cin, NHW), lane-dense

        # ---- conv1: stage im2col (9*Cin, NHW) via lane rolls + halo masks, one MXU dot
        for t, (dy, dx) in enumerate(taps):
            delta = (dy - PAD) * W + (dx - PAD)               # flat-index shift of this tap
            shifted = xv if delta == 0 else pltpu.roll(xv, (-delta) % NHW, axis=1)
            p1_ref[t * Cin:(t + 1) * Cin, :] = shifted * m_ref[t:t + 1, :]
        acc1 = jnp.dot(w1t_ref[...], p1_ref[...],
                       preferred_element_type=jnp.float32)    # (Cmid, NHW)

        # ---- BN1 (batch stats) + ReLU, lane-dense
        y1 = jnp.maximum(_bn_train(acc1, g1_ref[...], b1_ref[...], inv_n), 0.0)

        # ---- conv2: same halo handling directly on the register-resident y1
        for t, (dy, dx) in enumerate(taps):
            delta = (dy - PAD) * W + (dx - PAD)
            shifted = y1 if delta == 0 else pltpu.roll(y1, (-delta) % NHW, axis=1)
            p2_ref[t * Cmid:(t + 1) * Cmid, :] = shifted * m_ref[t:t + 1, :]
        acc2 = jnp.dot(w2t_ref[...], p2_ref[...],
                       preferred_element_type=jnp.float32)    # (Cout, NHW)

        # ---- BN2 + residual + ReLU; full-lane (Cout, NHW) store
        y2 = _bn_train(acc2, g2_ref[...], b2_ref[...], inv_n)
        o_ref[...] = jnp.maximum(y2 + xv, 0.0).astype(o_ref.dtype)

    return kernel


def res_double_conv(x_nchw, w1, w2, g1, b1, g2, b2):
    """x_nchw: (N,Cin,H,W) PyTorch layout; w1: (3,3,Cin,Cmid), w2: (3,3,Cmid,Cout) in HWIO.
    Returns the module output in NHWC: (N,H,W,Cout)."""
    N, Cin, H, W = x_nchw.shape
    Cmid = w1.shape[-1]
    Cout = w2.shape[-1]
    assert Cout == Cin, "residual add requires out_channels == in_channels"
    NHW = N * H * W

    # channels-leading, flattened-spatial-on-lane layout (wrapper-side layout plumbing)
    x_t = jnp.transpose(x_nchw, (1, 0, 2, 3)).reshape(Cin, NHW).astype(jnp.float32)
    w1t = jnp.transpose(w1, (3, 0, 1, 2)).reshape(Cmid, K * K * Cin).astype(jnp.float32)
    w2t = jnp.transpose(w2, (3, 0, 1, 2)).reshape(Cout, K * K * Cmid).astype(jnp.float32)

    # per-tap halo-validity masks over the flattened (n, h, w) axis
    i = jnp.arange(NHW, dtype=jnp.int32)
    h = (i % (H * W)) // W
    w = i % W
    masks = []
    for dy in range(K):
        for dx in range(K):
            oy, ox = dy - PAD, dx - PAD
            valid = (h + oy >= 0) & (h + oy < H) & (w + ox >= 0) & (w + ox < W)
            masks.append(valid)
    masks = jnp.stack(masks, axis=0).astype(jnp.float32)      # (9, NHW)

    args = (x_t, w1t, w2t, masks,
            g1.reshape(Cmid, 1).astype(jnp.float32), b1.reshape(Cmid, 1).astype(jnp.float32),
            g2.reshape(Cout, 1).astype(jnp.float32), b2.reshape(Cout, 1).astype(jnp.float32))

    def full_spec(a):
        nd = a.ndim
        return pl.BlockSpec(a.shape, lambda *_: (0,) * nd)

    out_t = pl.pallas_call(
        _make_kernel(N, H, W, Cin, Cmid, Cout),
        out_shape=jax.ShapeDtypeStruct((Cout, NHW), x_nchw.dtype),
        in_specs=[full_spec(a) for a in args],
        out_specs=pl.BlockSpec((Cout, NHW), lambda *_: (0, 0)),
        scratch_shapes=[pltpu.VMEM((K * K * Cin, NHW), jnp.float32),   # im2col stage, conv1
                        pltpu.VMEM((K * K * Cmid, NHW), jnp.float32)], # im2col stage, conv2
    )(*args)

    # present result as NHWC for the caller / reference check
    return jnp.transpose(out_t.reshape(Cout, N, H, W), (1, 2, 3, 0))


def reference(x_nhwc, w1, w2, g1, b1, g2, b2):
    """Pure-JAX reference of the PyTorch forward (training-mode BN)."""
    def conv(x, w):
        return lax.conv_general_dilated(
            x, w, window_strides=(1, 1), padding=((PAD, PAD), (PAD, PAD)),
            dimension_numbers=("NHWC", "HWIO", "NHWC"))

    def bn(y, g, b):
        mean = jnp.mean(y, axis=(0, 1, 2), keepdims=True)
        var = jnp.mean((y - mean) ** 2, axis=(0, 1, 2), keepdims=True)
        return (y - mean) * lax.rsqrt(var + EPS) * g + b

    y = jnp.maximum(bn(conv(x_nhwc, w1), g1, b1), 0.0)
    y = bn(conv(y, w2), g2, b2)
    return jnp.maximum(y + x_nhwc, 0.0)


if __name__ == "__main__":
    key = jax.random.PRNGKey(0)
    kx, kw1, kw2, kg1, kb1, kg2, kb2 = jax.random.split(key, 7)

    # in_channels = out_channels = 4 (required by the residual), middle_channel = 8
    N, Cin, H, W = 2, 4, 16, 16
    Cmid, Cout = 8, 4

    x_nchw = jax.random.normal(kx, (N, Cin, H, W), jnp.float32)           # PyTorch-style input
    w1 = 0.2 * jax.random.normal(kw1, (K, K, Cin, Cmid), jnp.float32)     # HWIO
    w2 = 0.2 * jax.random.normal(kw2, (K, K, Cmid, Cout), jnp.float32)    # HWIO
    g1 = 1.0 + 0.1 * jax.random.normal(kg1, (Cmid,), jnp.float32)
    b1 = 0.1 * jax.random.normal(kb1, (Cmid,), jnp.float32)
    g2 = 1.0 + 0.1 * jax.random.normal(kg2, (Cout,), jnp.float32)
    b2 = 0.1 * jax.random.normal(kb2, (Cout,), jnp.float32)

    out = jax.block_until_ready(res_double_conv(x_nchw, w1, w2, g1, b1, g2, b2))

    x_nhwc = jnp.transpose(x_nchw, (0, 2, 3, 1))
    ref = jax.block_until_ready(reference(x_nhwc, w1, w2, g1, b1, g2, b2))

    assert out.shape == (N, H, W, Cout)
    assert jnp.allclose(out, ref, rtol=1e-4, atol=1e-4), "mismatch vs JAX reference"
    print("KERNEL_OK")
</pallas_src>

<mosaic_0001>
module attributes {stable_mosaic.version = 11 : i64} {
  func.func @kernel(%arg0: memref<4x512xf32, #tpu.memory_space<vmem>>, %arg1: memref<8x36xf32, #tpu.memory_space<vmem>>, %arg2: memref<4x72xf32, #tpu.memory_space<vmem>>, %arg3: memref<9x512xf32, #tpu.memory_space<vmem>>, %arg4: memref<8x1xf32, #tpu.memory_space<vmem>>, %arg5: memref<8x1xf32, #tpu.memory_space<vmem>>, %arg6: memref<4x1xf32, #tpu.memory_space<vmem>>, %arg7: memref<4x1xf32, #tpu.memory_space<vmem>>, %arg8: memref<4x512xf32, #tpu.memory_space<vmem>>, %arg9: memref<36x512xf32, #tpu.memory_space<vmem>>, %arg10: memref<72x512xf32, #tpu.memory_space<vmem>>) attributes {dimension_semantics = [], scalar_prefetch = 0 : i64, scratch_operands = 2 : i64, tpu.core_type = #tpu.core_type<tc>} {
    %c0 = arith.constant 0 : index
    %c0_0 = arith.constant 0 : index
    %0 = vector.load %arg0[%c0, %c0_0] : memref<4x512xf32, #tpu.memory_space<vmem>>, vector<4x512xf32>
    %c17_i32 = arith.constant 17 : i32
    %1 = tpu.dynamic_rotate %0 by %c17_i32 dim 1 : vector<4x512xf32>, i32 -> vector<4x512xf32>
    %c0_1 = arith.constant 0 : index
    %c0_2 = arith.constant 0 : index
    %2 = vector.load %arg3[%c0_1, %c0_2] : memref<9x512xf32, #tpu.memory_space<vmem>>, vector<1x512xf32>
    %3 = vector.broadcast %2 : vector<1x512xf32> to vector<4x512xf32>
    %4 = arith.mulf %1, %3 : vector<4x512xf32>
    %c0_3 = arith.constant 0 : index
    %c0_4 = arith.constant 0 : index
    %5 = vector.load %arg9[%c0_3, %c0_4] : memref<36x512xf32, #tpu.memory_space<vmem>>, vector<4x512xf32>
    tpu.vector_store %arg9[%c0_3, %c0_4], %4 {strides = array<i32>} : memref<36x512xf32, #tpu.memory_space<vmem>>, vector<4x512xf32>,
    %c16_i32 = arith.constant 16 : i32
    %6 = tpu.dynamic_rotate %0 by %c16_i32 dim 1 : vector<4x512xf32>, i32 -> vector<4x512xf32>
    %c1 = arith.constant 1 : index
    %c0_5 = arith.constant 0 : index
    %7 = vector.load %arg3[%c1, %c0_5] : memref<9x512xf32, #tpu.memory_space<vmem>>, vector<1x512xf32>
    %8 = vector.broadcast %7 : vector<1x512xf32> to vector<4x512xf32>
    %9 = arith.mulf %6, %8 : vector<4x512xf32>
    %c4 = arith.constant 4 : index
    %c0_6 = arith.constant 0 : index
    %10 = vector.load %arg9[%c4, %c0_6] : memref<36x512xf32, #tpu.memory_space<vmem>>, vector<4x512xf32>
    tpu.vector_store %arg9[%c4, %c0_6], %9 {strides = array<i32>} : memref<36x512xf32, #tpu.memory_space<vmem>>, vector<4x512xf32>,
    %c15_i32 = arith.constant 15 : i32
    %11 = tpu.dynamic_rotate %0 by %c15_i32 dim 1 : vector<4x512xf32>, i32 -> vector<4x512xf32>
    %c2 = arith.constant 2 : index
    %c0_7 = arith.constant 0 : index
    %12 = vector.load %arg3[%c2, %c0_7] : memref<9x512xf32, #tpu.memory_space<vmem>>, vector<1x512xf32>
    %13 = vector.broadcast %12 : vector<1x512xf32> to vector<4x512xf32>
    %14 = arith.mulf %11, %13 : vector<4x512xf32>
    %c8 = arith.constant 8 : index
    %c0_8 = arith.constant 0 : index
    %15 = vector.load %arg9[%c8, %c0_8] : memref<36x512xf32, #tpu.memory_space<vmem>>, vector<4x512xf32>
    tpu.vector_store %arg9[%c8, %c0_8], %14 {strides = array<i32>} : memref<36x512xf32, #tpu.memory_space<vmem>>, vector<4x512xf32>,
    %c1_i32 = arith.constant 1 : i32
    %16 = tpu.dynamic_rotate %0 by %c1_i32 dim 1 : vector<4x512xf32>, i32 -> vector<4x512xf32>
    %c3 = arith.constant 3 : index
    %c0_9 = arith.constant 0 : index
    %17 = vector.load %arg3[%c3, %c0_9] : memref<9x512xf32, #tpu.memory_space<vmem>>, vector<1x512xf32>
    %18 = vector.broadcast %17 : vector<1x512xf32> to vector<4x512xf32>
    %19 = arith.mulf %16, %18 : vector<4x512xf32>
    %c12 = arith.constant 12 : index
    %c0_10 = arith.constant 0 : index
    %20 = vector.load %arg9[%c12, %c0_10] : memref<36x512xf32, #tpu.memory_space<vmem>>, vector<4x512xf32>
    tpu.vector_store %arg9[%c12, %c0_10], %19 {strides = array<i32>} : memref<36x512xf32, #tpu.memory_space<vmem>>, vector<4x512xf32>,
    %c4_11 = arith.constant 4 : index
    %c0_12 = arith.constant 0 : index
    %21 = vector.load %arg3[%c4_11, %c0_12] : memref<9x512xf32, #tpu.memory_space<vmem>>, vector<1x512xf32>
    %22 = vector.broadcast %21 : vector<1x512xf32> to vector<4x512xf32>
    %23 = arith.mulf %0, %22 : vector<4x512xf32>
    %c16 = arith.constant 16 : index
    %c0_13 = arith.constant 0 : index
    %24 = vector.load %arg9[%c16, %c0_13] : memref<36x512xf32, #tpu.memory_space<vmem>>, vector<4x512xf32>
    tpu.vector_store %arg9[%c16, %c0_13], %23 {strides = array<i32>} : memref<36x512xf32, #tpu.memory_space<vmem>>, vector<4x512xf32>,
    %c511_i32 = arith.constant 511 : i32
    %25 = tpu.dynamic_rotate %0 by %c511_i32 dim 1 : vector<4x512xf32>, i32 -> vector<4x512xf32>
    %c5 = arith.constant 5 : index
    %c0_14 = arith.constant 0 : index
    %26 = vector.load %arg3[%c5, %c0_14] : memref<9x512xf32, #tpu.memory_space<vmem>>, vector<1x512xf32>
    %27 = vector.broadcast %26 : vector<1x512xf32> to vector<4x512xf32>
    %28 = arith.mulf %25, %27 : vector<4x512xf32>
    %c20 = arith.constant 20 : index
    %c0_15 = arith.constant 0 : index
    %29 = vector.load %arg9[%c20, %c0_15] : memref<36x512xf32, #tpu.memory_space<vmem>>, vector<4x512xf32>
    tpu.vector_store %arg9[%c20, %c0_15], %28 {strides = array<i32>} : memref<36x512xf32, #tpu.memory_space<vmem>>, vector<4x512xf32>,
    %c497_i32 = arith.constant 497 : i32
    %30 = tpu.dynamic_rotate %0 by %c497_i32 dim 1 : vector<4x512xf32>, i32 -> vector<4x512xf32>
    %c6 = arith.constant 6 : index
    %c0_16 = arith.constant 0 : index
    %31 = vector.load %arg3[%c6, %c0_16] : memref<9x512xf32, #tpu.memory_space<vmem>>, vector<1x512xf32>
    %32 = vector.broadcast %31 : vector<1x512xf32> to vector<4x512xf32>
    %33 = arith.mulf %30, %32 : vector<4x512xf32>
    %c24 = arith.constant 24 : index
    %c0_17 = arith.constant 0 : index
    %34 = vector.load %arg9[%c24, %c0_17] : memref<36x512xf32, #tpu.memory_space<vmem>>, vector<4x512xf32>
    tpu.vector_store %arg9[%c24, %c0_17], %33 {strides = array<i32>} : memref<36x512xf32, #tpu.memory_space<vmem>>, vector<4x512xf32>,
    %c496_i32 = arith.constant 496 : i32
    %35 = tpu.dynamic_rotate %0 by %c496_i32 dim 1 : vector<4x512xf32>, i32 -> vector<4x512xf32>
    %c7 = arith.constant 7 : index
    %c0_18 = arith.constant 0 : index
    %36 = vector.load %arg3[%c7, %c0_18] : memref<9x512xf32, #tpu.memory_space<vmem>>, vector<1x512xf32>
    %37 = vector.broadcast %36 : vector<1x512xf32> to vector<4x512xf32>
    %38 = arith.mulf %35, %37 : vector<4x512xf32>
    %c28 = arith.constant 28 : index
    %c0_19 = arith.constant 0 : index
    %39 = vector.load %arg9[%c28, %c0_19] : memref<36x512xf32, #tpu.memory_space<vmem>>, vector<4x512xf32>
    tpu.vector_store %arg9[%c28, %c0_19], %38 {strides = array<i32>} : memref<36x512xf32, #tpu.memory_space<vmem>>, vector<4x512xf32>,
    %c495_i32 = arith.constant 495 : i32
    %40 = tpu.dynamic_rotate %0 by %c495_i32 dim 1 : vector<4x512xf32>, i32 -> vector<4x512xf32>
    %c8_20 = arith.constant 8 : index
    %c0_21 = arith.constant 0 : index
    %41 = vector.load %arg3[%c8_20, %c0_21] : memref<9x512xf32, #tpu.memory_space<vmem>>, vector<1x512xf32>
    %42 = vector.broadcast %41 : vector<1x512xf32> to vector<4x512xf32>
    %43 = arith.mulf %40, %42 : vector<4x512xf32>
    %c32 = arith.constant 32 : index
    %c0_22 = arith.constant 0 : index
    %44 = vector.load %arg9[%c32, %c0_22] : memref<36x512xf32, #tpu.memory_space<vmem>>, vector<4x512xf32>
    tpu.vector_store %arg9[%c32, %c0_22], %43 {strides = array<i32>} : memref<36x512xf32, #tpu.memory_space<vmem>>, vector<4x512xf32>,
    %c0_23 = arith.constant 0 : index
    %c0_24 = arith.constant 0 : index
    %45 = vector.load %arg1[%c0_23, %c0_24] : memref<8x36xf32, #tpu.memory_space<vmem>>, vector<8x36xf32>
    %c0_25 = arith.constant 0 : index
    %c0_26 = arith.constant 0 : index
    %46 = vector.load %arg9[%c0_25, %c0_26] : memref<36x512xf32, #tpu.memory_space<vmem>>, vector<36x512xf32>
    %cst = arith.constant dense<0.000000e+00> : vector<8x512xf32>
    %47 = tpu.matmul %45, %46, %cst {dimension_numbers = #tpu.dot_dimension_numbers<[1], [0], [0], [1], [0, 0, 1, 1], [], []>} : vector<8x36xf32>, vector<36x512xf32>, vector<8x512xf32> -> vector<8x512xf32>
    %c0_27 = arith.constant 0 : index
    %c0_28 = arith.constant 0 : index
    %48 = vector.load %arg4[%c0_27, %c0_28] : memref<8x1xf32, #tpu.memory_space<vmem>>, vector<8x1xf32>
    %c0_29 = arith.constant 0 : index
    %c0_30 = arith.constant 0 : index
    %49 = vector.load %arg5[%c0_29, %c0_30] : memref<8x1xf32, #tpu.memory_space<vmem>>, vector<8x1xf32>
    %cst_31 = arith.constant dense<0.000000e+00> : vector<8xf32>
    %50 = vector.multi_reduction <add>, %47, %cst_31 [1] : vector<8x512xf32> to vector<8xf32>
    %51 = vector.shape_cast %50 : vector<8xf32> to vector<8x1xf32>
    %52 = arith.mulf %47, %47 : vector<8x512xf32>
    %cst_32 = arith.constant dense<0.000000e+00> : vector<8xf32>
    %53 = vector.multi_reduction <add>, %52, %cst_32 [1] : vector<8x512xf32> to vector<8xf32>
    %54 = vector.shape_cast %53 : vector<8xf32> to vector<8x1xf32>
    %cst_33 = arith.constant 0.001953125 : f32
    %55 = vector.broadcast %cst_33 : f32 to vector<8x1xf32>
    %56 = arith.mulf %51, %55 : vector<8x1xf32>
    %cst_34 = arith.constant 0.001953125 : f32
    %57 = vector.broadcast %cst_34 : f32 to vector<8x1xf32>
    %58 = arith.mulf %54, %57 : vector<8x1xf32>
    %59 = arith.mulf %56, %56 : vector<8x1xf32>
    %60 = arith.subf %58, %59 : vector<8x1xf32>
    %61 = vector.broadcast %56 : vector<8x1xf32> to vector<8x512xf32>
    %62 = arith.subf %47, %61 : vector<8x512xf32>
    %cst_35 = arith.constant 9.99999974E-6 : f32
    %63 = vector.broadcast %cst_35 : f32 to vector<8x1xf32>
    %64 = arith.addf %60, %63 : vector<8x1xf32>
    %65 = math.rsqrt %64 : vector<8x1xf32>
    %66 = vector.broadcast %65 : vector<8x1xf32> to vector<8x512xf32>
    %67 = arith.mulf %62, %66 : vector<8x512xf32>
    %68 = vector.broadcast %48 : vector<8x1xf32> to vector<8x512xf32>
    %69 = arith.mulf %67, %68 : vector<8x512xf32>
    %70 = vector.broadcast %49 : vector<8x1xf32> to vector<8x512xf32>
    %71 = arith.addf %69, %70 : vector<8x512xf32>
    %cst_36 = arith.constant 0.000000e+00 : f32
    %72 = vector.broadcast %cst_36 : f32 to vector<8x512xf32>
    %73 = arith.maximumf %71, %72 : vector<8x512xf32>
    %c17_i32_37 = arith.constant 17 : i32
    %74 = tpu.dynamic_rotate %73 by %c17_i32_37 dim 1 : vector<8x512xf32>, i32 -> vector<8x512xf32>
    %c0_38 = arith.constant 0 : index
    %c0_39 = arith.constant 0 : index
    %75 = vector.load %arg3[%c0_38, %c0_39] : memref<9x512xf32, #tpu.memory_space<vmem>>, vector<1x512xf32>
    %76 = vector.broadcast %75 : vector<1x512xf32> to vector<8x512xf32>
    %77 = arith.mulf %74, %76 : vector<8x512xf32>
    %c0_40 = arith.constant 0 : index
    %c0_41 = arith.constant 0 : index
    %78 = vector.load %arg10[%c0_40, %c0_41] : memref<72x512xf32, #tpu.memory_space<vmem>>, vector<8x512xf32>
    tpu.vector_store %arg10[%c0_40, %c0_41], %77 {strides = array<i32>} : memref<72x512xf32, #tpu.memory_space<vmem>>, vector<8x512xf32>,
    %c16_i32_42 = arith.constant 16 : i32
    %79 = tpu.dynamic_rotate %73 by %c16_i32_42 dim 1 : vector<8x512xf32>, i32 -> vector<8x512xf32>
    %c1_43 = arith.constant 1 : index
    %c0_44 = arith.constant 0 : index
    %80 = vector.load %arg3[%c1_43, %c0_44] : memref<9x512xf32, #tpu.memory_space<vmem>>, vector<1x512xf32>
    %81 = vector.broadcast %80 : vector<1x512xf32> to vector<8x512xf32>
    %82 = arith.mulf %79, %81 : vector<8x512xf32>
    %c8_45 = arith.constant 8 : index
    %c0_46 = arith.constant 0 : index
    %83 = vector.load %arg10[%c8_45, %c0_46] : memref<72x512xf32, #tpu.memory_space<vmem>>, vector<8x512xf32>
    tpu.vector_store %arg10[%c8_45, %c0_46], %82 {strides = array<i32>} : memref<72x512xf32, #tpu.memory_space<vmem>>, vector<8x512xf32>,
    %c15_i32_47 = arith.constant 15 : i32
    %84 = tpu.dynamic_rotate %73 by %c15_i32_47 dim 1 : vector<8x512xf32>, i32 -> vector<8x512xf32>
    %c2_48 = arith.constant 2 : index
    %c0_49 = arith.constant 0 : index
    %85 = vector.load %arg3[%c2_48, %c0_49] : memref<9x512xf32, #tpu.memory_space<vmem>>, vector<1x512xf32>
    %86 = vector.broadcast %85 : vector<1x512xf32> to vector<8x512xf32>
    %87 = arith.mulf %84, %86 : vector<8x512xf32>
    %c16_50 = arith.constant 16 : index
    %c0_51 = arith.constant 0 : index
    %88 = vector.load %arg10[%c16_50, %c0_51] : memref<72x512xf32, #tpu.memory_space<vmem>>, vector<8x512xf32>
    tpu.vector_store %arg10[%c16_50, %c0_51], %87 {strides = array<i32>} : memref<72x512xf32, #tpu.memory_space<vmem>>, vector<8x512xf32>,
    %c1_i32_52 = arith.constant 1 : i32
    %89 = tpu.dynamic_rotate %73 by %c1_i32_52 dim 1 : vector<8x512xf32>, i32 -> vector<8x512xf32>
    %c3_53 = arith.constant 3 : index
    %c0_54 = arith.constant 0 : index
    %90 = vector.load %arg3[%c3_53, %c0_54] : memref<9x512xf32, #tpu.memory_space<vmem>>, vector<1x512xf32>
    %91 = vector.broadcast %90 : vector<1x512xf32> to vector<8x512xf32>
    %92 = arith.mulf %89, %91 : vector<8x512xf32>
    %c24_55 = arith.constant 24 : index
    %c0_56 = arith.constant 0 : index
    %93 = vector.load %arg10[%c24_55, %c0_56] : memref<72x512xf32, #tpu.memory_space<vmem>>, vector<8x512xf32>
    tpu.vector_store %arg10[%c24_55, %c0_56], %92 {strides = array<i32>} : memref<72x512xf32, #tpu.memory_space<vmem>>, vector<8x512xf32>,
    %c4_57 = arith.constant 4 : index
    %c0_58 = arith.constant 0 : index
    %94 = vector.load %arg3[%c4_57, %c0_58] : memref<9x512xf32, #tpu.memory_space<vmem>>, vector<1x512xf32>
    %95 = vector.broadcast %94 : vector<1x512xf32> to vector<8x512xf32>
    %96 = arith.mulf %73, %95 : vector<8x512xf32>
    %c32_59 = arith.constant 32 : index
    %c0_60 = arith.constant 0 : index
    %97 = vector.load %arg10[%c32_59, %c0_60] : memref<72x512xf32, #tpu.memory_space<vmem>>, vector<8x512xf32>
    tpu.vector_store %arg10[%c32_59, %c0_60], %96 {strides = array<i32>} : memref<72x512xf32, #tpu.memory_space<vmem>>, vector<8x512xf32>,
    %c511_i32_61 = arith.constant 511 : i32
    %98 = tpu.dynamic_rotate %73 by %c511_i32_61 dim 1 : vector<8x512xf32>, i32 -> vector<8x512xf32>
    %c5_62 = arith.constant 5 : index
    %c0_63 = arith.constant 0 : index
    %99 = vector.load %arg3[%c5_62, %c0_63] : memref<9x512xf32, #tpu.memory_space<vmem>>, vector<1x512xf32>
    %100 = vector.broadcast %99 : vector<1x512xf32> to vector<8x512xf32>
    %101 = arith.mulf %98, %100 : vector<8x512xf32>
    %c40 = arith.constant 40 : index
    %c0_64 = arith.constant 0 : index
    %102 = vector.load %arg10[%c40, %c0_64] : memref<72x512xf32, #tpu.memory_space<vmem>>, vector<8x512xf32>
    tpu.vector_store %arg10[%c40, %c0_64], %101 {strides = array<i32>} : memref<72x512xf32, #tpu.memory_space<vmem>>, vector<8x512xf32>,
    %c497_i32_65 = arith.constant 497 : i32
    %103 = tpu.dynamic_rotate %73 by %c497_i32_65 dim 1 : vector<8x512xf32>, i32 -> vector<8x512xf32>
    %c6_66 = arith.constant 6 : index
    %c0_67 = arith.constant 0 : index
    %104 = vector.load %arg3[%c6_66, %c0_67] : memref<9x512xf32, #tpu.memory_space<vmem>>, vector<1x512xf32>
    %105 = vector.broadcast %104 : vector<1x512xf32> to vector<8x512xf32>
    %106 = arith.mulf %103, %105 : vector<8x512xf32>
    %c48 = arith.constant 48 : index
    %c0_68 = arith.constant 0 : index
    %107 = vector.load %arg10[%c48, %c0_68] : memref<72x512xf32, #tpu.memory_space<vmem>>, vector<8x512xf32>
    tpu.vector_store %arg10[%c48, %c0_68], %106 {strides = array<i32>} : memref<72x512xf32, #tpu.memory_space<vmem>>, vector<8x512xf32>,
    %c496_i32_69 = arith.constant 496 : i32
    %108 = tpu.dynamic_rotate %73 by %c496_i32_69 dim 1 : vector<8x512xf32>, i32 -> vector<8x512xf32>
    %c7_70 = arith.constant 7 : index
    %c0_71 = arith.constant 0 : index
    %109 = vector.load %arg3[%c7_70, %c0_71] : memref<9x512xf32, #tpu.memory_space<vmem>>, vector<1x512xf32>
    %110 = vector.broadcast %109 : vector<1x512xf32> to vector<8x512xf32>
    %111 = arith.mulf %108, %110 : vector<8x512xf32>
    %c56 = arith.constant 56 : index
    %c0_72 = arith.constant 0 : index
    %112 = vector.load %arg10[%c56, %c0_72] : memref<72x512xf32, #tpu.memory_space<vmem>>, vector<8x512xf32>
    tpu.vector_store %arg10[%c56, %c0_72], %111 {strides = array<i32>} : memref<72x512xf32, #tpu.memory_space<vmem>>, vector<8x512xf32>,
    %c495_i32_73 = arith.constant 495 : i32
    %113 = tpu.dynamic_rotate %73 by %c495_i32_73 dim 1 : vector<8x512xf32>, i32 -> vector<8x512xf32>
    %c8_74 = arith.constant 8 : index
    %c0_75 = arith.constant 0 : index
    %114 = vector.load %arg3[%c8_74, %c0_75] : memref<9x512xf32, #tpu.memory_space<vmem>>, vector<1x512xf32>
    %115 = vector.broadcast %114 : vector<1x512xf32> to vector<8x512xf32>
    %116 = arith.mulf %113, %115 : vector<8x512xf32>
    %c64 = arith.constant 64 : index
    %c0_76 = arith.constant 0 : index
    %117 = vector.load %arg10[%c64, %c0_76] : memref<72x512xf32, #tpu.memory_space<vmem>>, vector<8x512xf32>
    tpu.vector_store %arg10[%c64, %c0_76], %116 {strides = array<i32>} : memref<72x512xf32, #tpu.memory_space<vmem>>, vector<8x512xf32>,
    %c0_77 = arith.constant 0 : index
    %c0_78 = arith.constant 0 : index
    %118 = vector.load %arg2[%c0_77, %c0_78] : memref<4x72xf32, #tpu.memory_space<vmem>>, vector<4x72xf32>
    %c0_79 = arith.constant 0 : index
    %c0_80 = arith.constant 0 : index
    %119 = vector.load %arg10[%c0_79, %c0_80] : memref<72x512xf32, #tpu.memory_space<vmem>>, vector<72x512xf32>
    %cst_81 = arith.constant dense<0.000000e+00> : vector<4x512xf32>
    %120 = tpu.matmul %118, %119, %cst_81 {dimension_numbers = #tpu.dot_dimension_numbers<[1], [0], [0], [1], [0, 0, 1, 1], [], []>} : vector<4x72xf32>, vector<72x512xf32>, vector<4x512xf32> -> vector<4x512xf32>
    %c0_82 = arith.constant 0 : index
    %c0_83 = arith.constant 0 : index
    %121 = vector.load %arg6[%c0_82, %c0_83] : memref<4x1xf32, #tpu.memory_space<vmem>>, vector<4x1xf32>
    %c0_84 = arith.constant 0 : index
    %c0_85 = arith.constant 0 : index
    %122 = vector.load %arg7[%c0_84, %c0_85] : memref<4x1xf32, #tpu.memory_space<vmem>>, vector<4x1xf32>
    %cst_86 = arith.constant dense<0.000000e+00> : vector<4xf32>
    %123 = vector.multi_reduction <add>, %120, %cst_86 [1] : vector<4x512xf32> to vector<4xf32>
    %124 = vector.shape_cast %123 : vector<4xf32> to vector<4x1xf32>
    %125 = arith.mulf %120, %120 : vector<4x512xf32>
    %cst_87 = arith.constant dense<0.000000e+00> : vector<4xf32>
    %126 = vector.multi_reduction <add>, %125, %cst_87 [1] : vector<4x512xf32> to vector<4xf32>
    %127 = vector.shape_cast %126 : vector<4xf32> to vector<4x1xf32>
    %cst_88 = arith.constant 0.001953125 : f32
    %128 = vector.broadcast %cst_88 : f32 to vector<4x1xf32>
    %129 = arith.mulf %124, %128 : vector<4x1xf32>
    %cst_89 = arith.constant 0.001953125 : f32
    %130 = vector.broadcast %cst_89 : f32 to vector<4x1xf32>
    %131 = arith.mulf %127, %130 : vector<4x1xf32>
    %132 = arith.mulf %129, %129 : vector<4x1xf32>
    %133 = arith.subf %131, %132 : vector<4x1xf32>
    %134 = vector.broadcast %129 : vector<4x1xf32> to vector<4x512xf32>
    %135 = arith.subf %120, %134 : vector<4x512xf32>
    %cst_90 = arith.constant 9.99999974E-6 : f32
    %136 = vector.broadcast %cst_90 : f32 to vector<4x1xf32>
    %137 = arith.addf %133, %136 : vector<4x1xf32>
    %138 = math.rsqrt %137 : vector<4x1xf32>
    %139 = vector.broadcast %138 : vector<4x1xf32> to vector<4x512xf32>
    %140 = arith.mulf %135, %139 : vector<4x512xf32>
    %141 = vector.broadcast %121 : vector<4x1xf32> to vector<4x512xf32>
    %142 = arith.mulf %140, %141 : vector<4x512xf32>
    %143 = vector.broadcast %122 : vector<4x1xf32> to vector<4x512xf32>
    %144 = arith.addf %142, %143 : vector<4x512xf32>
    %145 = arith.addf %144, %0 : vector<4x512xf32>
    %cst_91 = arith.constant 0.000000e+00 : f32
    %146 = vector.broadcast %cst_91 : f32 to vector<4x512xf32>
    %147 = arith.maximumf %145, %146 : vector<4x512xf32>
    %c0_92 = arith.constant 0 : index
    %c0_93 = arith.constant 0 : index
    %148 = vector.load %arg8[%c0_92, %c0_93] : memref<4x512xf32, #tpu.memory_space<vmem>>, vector<4x512xf32>
    tpu.vector_store %arg8[%c0_92, %c0_93], %147 {strides = array<i32>} : memref<4x512xf32, #tpu.memory_space<vmem>>, vector<4x512xf32>,
    return
  }
}

</mosaic_0001>

<llo_original>
// kernel: tpu_custom_call.1
$region0: #{tpu_custom_call.1}
  #allocation0 [shape = 'u32[]', space=smem, size = 0x4, offset = 0x4, fixed_abs, tag = 'smem constant byte address 0x4 - core index']
  #allocation1 [shape = 'u32[144,128]{1,0:T(1,128)}', space=vmem, size = 0x12000, scoped, tag = 'internal scratch']
  #allocation2 [shape = 'f32[36,512]{1,0:T(8,128)}', space=vmem, size = 0x14000, scoped, tag = 'scratch operand']
  #allocation3 [shape = 'f32[72,512]{1,0:T(8,128)}', space=vmem, size = 0x24000, scoped, tag = 'scratch operand']
  %s0 = inlined_call_operand.vmem [shape: f32[4,512], index: 0, kind: input, shape index: {}]
  %s1 = inlined_call_operand.vmem [shape: f32[8,36], index: 1, kind: input, shape index: {}]
  %s2 = inlined_call_operand.vmem [shape: f32[4,72], index: 2, kind: input, shape index: {}]
  %s3 = inlined_call_operand.hbm [shape: f32[9,512], index: 3, kind: input, shape index: {}]
  %s4 = inlined_call_operand.vmem [shape: f32[8,1], index: 4, kind: input, shape index: {}]
  %s5 = inlined_call_operand.vmem [shape: f32[8,1], index: 5, kind: input, shape index: {}]
  %s6 = inlined_call_operand.vmem [shape: f32[4,1], index: 6, kind: input, shape index: {}]
  %s7 = inlined_call_operand.vmem [shape: f32[4,1], index: 7, kind: input, shape index: {}]
  %s8 = inlined_call_operand.hbm [shape: f32[4,512], index: 8, kind: output, shape index: {}]
  %s9 = sld [smem:[#allocation0]]
  $region46: #{tpu_custom_call.1} parent=0
    _
  %s11 = ssub.s32 1, %s9
  %s12 = scalar_select 0, %s11, %s9
  $region1: #{tpu_custom_call.1} parent=0
    #allocation4 [shape = 'u8[32768]{0}', space=vmem, size = 0x8000, scoped, tag = 'input window, operand 3, single buffered']
    #allocation5 [shape = 's32[1]{0}', space=sflag, size = 0x4, scoped, tag = 'scoped memory for tpu_custom_call.1']
    #allocation6 [shape = 's32[1]{0}', space=sflag, size = 0x4, scoped, tag = 'scoped memory for tpu_custom_call.1']
    #allocation7 [shape = 'u8[8192]{0}', space=vmem, size = 0x2000, scoped, tag = 'output window, operand 0, single buffered']
    %13 = vsyncpa [#allocation5], 0
    %14 = vsyncpa [#allocation6], 0
    // Predicated region
    $region2: #{tpu_custom_call.1} parent=1 // pred_check
      _
    $region3: #{tpu_custom_call.1} parent=1 // pred_check_branch
      %16 = sbr.rel (0) target = $region5
    $region4: #{tpu_custom_call.1} parent=1 // pred_region
      _
    $region5: #{tpu_custom_call.1} parent=1 // pred_fallthru
      _
    // Predicated region
    $region6: #{tpu_custom_call.1} parent=1 // pred_check
      _
    $region7: #{tpu_custom_call.1} parent=1 // pred_check_branch
      %18 = sbr.rel (0) target = $region9
    $region8: #{tpu_custom_call.1} parent=1 // pred_region
      _
    $region9: #{tpu_custom_call.1} parent=1 // pred_fallthru
      _
    // Predicated region
    $region10: #{tpu_custom_call.1} parent=1 // pred_check
      _
    $region11: #{tpu_custom_call.1} parent=1 // pred_check_branch
      %20 = sbr.rel (0) target = $region13
    $region12: #{tpu_custom_call.1} parent=1 // pred_region
      _
    $region13: #{tpu_custom_call.1} parent=1 // pred_fallthru
      _
    // Predicated region
    $region14: #{tpu_custom_call.1} parent=1 // pred_check
      _
    $region15: #{tpu_custom_call.1} parent=1 // pred_check_branch
      %22 = sbr.rel (0) target = $region17
    $region16: #{tpu_custom_call.1} parent=1 // pred_region
      %s24 = ssub.s32 1024, 1024
      %25 = vsyncadd [#allocation5], %s24
      %s26 = sshll.u32 [#allocation4], 4
      %s27 = int_to_ptr.vmem [resolvable:$true] %s26
      %32 = dma.hbm_to_vmem [thread:$0]  %s3, 1024, %s27, [#allocation5], 512, 512, 32
    $region17: #{tpu_custom_call.1} parent=1 // pred_fallthru
      _
    // Predicated region
    $region18: #{tpu_custom_call.1} parent=1 // pred_check
      _
    $region19: #{tpu_custom_call.1} parent=1 // pred_check_branch
      %34 = sbr.rel (0) target = $region21
    $region20: #{tpu_custom_call.1} parent=1 // pred_region
      _
    $region21: #{tpu_custom_call.1} parent=1 // pred_fallthru
      _
    // Predicated region
    $region22: #{tpu_custom_call.1} parent=1 // pred_check
      _
    $region23: #{tpu_custom_call.1} parent=1 // pred_check_branch
      %36 = sbr.rel (0) target = $region25
    $region24: #{tpu_custom_call.1} parent=1 // pred_region
      _
    $region25: #{tpu_custom_call.1} parent=1 // pred_fallthru
      _
    // Predicated region
    $region26: #{tpu_custom_call.1} parent=1 // pred_check
      _
    $region27: #{tpu_custom_call.1} parent=1 // pred_check_branch
      %38 = sbr.rel (0) target = $region29
    $region28: #{tpu_custom_call.1} parent=1 // pred_region
      _
    $region29: #{tpu_custom_call.1} parent=1 // pred_fallthru
      _
    // Predicated region
    $region30: #{tpu_custom_call.1} parent=1 // pred_check
      _
    $region31: #{tpu_custom_call.1} parent=1 // pred_check_branch
      %40 = sbr.rel (0) target = $region33
    $region32: #{tpu_custom_call.1} parent=1 // pred_region
      _
    $region33: #{tpu_custom_call.1} parent=1 // pred_fallthru
      _
    // Predicated region
    $region34: #{tpu_custom_call.1} parent=1 // pred_check
      _
    $region35: #{tpu_custom_call.1} parent=1 // pred_check_branch
      %42 = sbr.rel (0) target = $region37
    $region36: #{tpu_custom_call.1} parent=1 // pred_region
      %43 = dma.done [#allocation5], 1024
    $region37: #{tpu_custom_call.1} parent=1 // pred_fallthru
      _
    %v44 = vld [vmem:[%s0] sm:$0xff]
    %v45 = vld [vmem:[%s0 + $0x8] sm:$0xff]
    %v48 = vcombine.high %v44, %v44
    %v49 = vcombine.high %v45, %v45
    %52 = vrot.lane.b32.xlu0 %v44, 17
    %v53 = vpop.permute.xlu0 %52
    %54 = vrot.lane.b32.xlu0 %v48, 17
    %v55 = vpop.permute.xlu0 %54
    %56 = vrot.lane.b32.xlu0 %v45, 17
    %v57 = vpop.permute.xlu0 %56
    %58 = vrot.lane.b32.xlu0 %v49, 17
    %v59 = vpop.permute.xlu0 %58
    %v60 = vlaneseq
    %v61 = vand.u32 %v60, 127
    %vm62 = vcmp.lt.s32.totalorder %v61, 17
    %v63 = vsel %vm62, %v57, %v59
    %v64 = vsel %vm62, %v55, %v57
    %v65 = vsel %vm62, %v53, %v55
    %v66 = vsel %vm62, %v59, %v53
    %v67 = vld [vmem:[#allocation4] ss:$8 sm:$0xf]
    %v69 = vlaneseq
    %v70 = vshrl.u32 %v69, 7
    %v71 = vsub.s32 0, %v70
    %v72 = vrot.slane %v67, %v71
    %v73 = vlaneseq
    %v74 = vshrl.u32 %v73, 7
    %v75 = vsub.s32 1, %v74
    %v76 = vrot.slane %v67, %v75
    %v77 = vlaneseq
    %v78 = vshrl.u32 %v77, 7
    %v79 = vsub.s32 2, %v78
    %v80 = vrot.slane %v67, %v79
    %v81 = vlaneseq
    %v82 = vshrl.u32 %v81, 7
    %v83 = vsub.s32 3, %v82
    %v84 = vrot.slane %v67, %v83
    %v89 = vmul.f32 %v66, %v72
    %v90 = vmul.f32 %v65, %v76
    %v91 = vmul.f32 %v64, %v80
    %v92 = vmul.f32 %v63, %v84
    %93 = vst [vmem:[#allocation2] sm:$0xf] %v89
    %94 = vst [vmem:[#allocation2 + $0x8] sm:$0xf] %v90
    %95 = vst [vmem:[#allocation2 + $0x10] sm:$0xf] %v91
    %96 = vst [vmem:[#allocation2 + $0x18] sm:$0xf] %v92
    %97 = vrot.lane.b32.xlu0 %v44, 16
    %v98 = vpop.permute.xlu0 %97
    %99 = vrot.lane.b32.xlu0 %v48, 16
    %v100 = vpop.permute.xlu0 %99
    %101 = vrot.lane.b32.xlu0 %v45, 16
    %v102 = vpop.permute.xlu0 %101
    %103 = vrot.lane.b32.xlu0 %v49, 16
    %v104 = vpop.permute.xlu0 %103
    %vm105 = vcmp.lt.s32.totalorder %v61, 16
    %v106 = vsel %vm105, %v102, %v104
    %v107 = vsel %vm105, %v100, %v102
    %v108 = vsel %vm105, %v98, %v100
    %v109 = vsel %vm105, %v104, %v98
    %s110 = scalar_lea.vmem [#allocation4], 1
    %v111 = vld [vmem:[%s110] ss:$8 sm:$0xf]
    %v113 = vlaneseq
    %v114 = vshrl.u32 %v113, 7
    %v115 = vsub.s32 0, %v114
    %v116 = vrot.slane %v111, %v115
    %v117 = vlaneseq
    %v118 = vshrl.u32 %v117, 7
    %v119 = vsub.s32 1, %v118
    %v120 = vrot.slane %v111, %v119
    %v121 = vlaneseq
    %v122 = vshrl.u32 %v121, 7
    %v123 = vsub.s32 2, %v122
    %v124 = vrot.slane %v111, %v123
    %v125 = vlaneseq
    %v126 = vshrl.u32 %v125, 7
    %v127 = vsub.s32 3, %v126
    %v128 = vrot.slane %v111, %v127
    %v133 = vmul.f32 %v109, %v116
    %v134 = vmul.f32 %v108, %v120
    %v135 = vmul.f32 %v107, %v124
    %v136 = vmul.f32 %v106, %v128
    %v141 = vrot.slane %v133, 4
    %v142 = vrot.slane %v134, 4
    %v143 = vrot.slane %v135, 4
    %v144 = vrot.slane %v136, 4
    %149 = vst [vmem:[#allocation2] sm:$0xf0] %v141
    %150 = vst [vmem:[#allocation2 + $0x8] sm:$0xf0] %v142
    %151 = vst [vmem:[#allocation2 + $0x10] sm:$0xf0] %v143
    %152 = vst [vmem:[#allocation2 + $0x18] sm:$0xf0] %v144
    %153 = vrot.lane.b32.xlu0 %v44, 15
    %v154 = vpop.permute.xlu0 %153
    %155 = vrot.lane.b32.xlu0 %v48, 15
    %v156 = vpop.permute.xlu0 %155
    %157 = vrot.lane.b32.xlu0 %v45, 15
    %v158 = vpop.permute.xlu0 %157
    %159 = vrot.lane.b32.xlu0 %v49, 15
    %v160 = vpop.permute.xlu0 %159
    %vm161 = vcmp.lt.s32.totalorder %v61, 15
    %v162 = vsel %vm161, %v158, %v160
    %v163 = vsel %vm161, %v156, %v158
    %v164 = vsel %vm161, %v154, %v156
    %v165 = vsel %vm161, %v160, %v154
    %s166 = scalar_lea.vmem [#allocation4], 2
    %v167 = vld [vmem:[%s166] ss:$8 sm:$0xf]
    %v169 = vlaneseq
    %v170 = vshrl.u32 %v169, 7
    %v171 = vsub.s32 0, %v170
    %v172 = vrot.slane %v167, %v171
    %v173 = vlaneseq
    %v174 = vshrl.u32 %v173, 7
    %v175 = vsub.s32 1, %v174
    %v176 = vrot.slane %v167, %v175
    %v177 = vlaneseq
    %v178 = vshrl.u32 %v177, 7
    %v179 = vsub.s32 2, %v178
    %v180 = vrot.slane %v167, %v179
    %v181 = vlaneseq
    %v182 = vshrl.u32 %v181, 7
    %v183 = vsub.s32 3, %v182
    %v184 = vrot.slane %v167, %v183
    %v189 = vmul.f32 %v165, %v172
    %v190 = vmul.f32 %v164, %v176
    %v191 = vmul.f32 %v163, %v180
    %v192 = vmul.f32 %v162, %v184
    %193 = vst [vmem:[#allocation2 + $0x20] sm:$0xf] %v189
    %194 = vst [vmem:[#allocation2 + $0x28] sm:$0xf] %v190
    %195 = vst [vmem:[#allocation2 + $0x30] sm:$0xf] %v191
    %196 = vst [vmem:[#allocation2 + $0x38] sm:$0xf] %v192
    %197 = vrot.lane.b32.xlu0 %v44, 1
    %v198 = vpop.permute.xlu0 %197
    %199 = vrot.lane.b32.xlu0 %v48, 1
    %v200 = vpop.permute.xlu0 %199
    %201 = vrot.lane.b32.xlu0 %v45, 1
    %v202 = vpop.permute.xlu0 %201
    %203 = vrot.lane.b32.xlu0 %v49, 1
    %v204 = vpop.permute.xlu0 %203
    %vm205 = vcmp.lt.s32.totalorder %v61, 1
    %v206 = vsel %vm205, %v202, %v204
    %v207 = vsel %vm205, %v200, %v202
    %v208 = vsel %vm205, %v198, %v200
    %v209 = vsel %vm205, %v204, %v198
    %s210 = scalar_lea.vmem [#allocation4], 3
    %v211 = vld [vmem:[%s210] ss:$8 sm:$0xf]
    %v213 = vlaneseq
    %v214 = vshrl.u32 %v213, 7
    %v215 = vsub.s32 0, %v214
    %v216 = vrot.slane %v211, %v215
    %v217 = vlaneseq
    %v218 = vshrl.u32 %v217, 7
    %v219 = vsub.s32 1, %v218
    %v220 = vrot.slane %v211, %v219
    %v221 = vlaneseq
    %v222 = vshrl.u32 %v221, 7
    %v223 = vsub.s32 2, %v222
    %v224 = vrot.slane %v211, %v223
    %v225 = vlaneseq
    %v226 = vshrl.u32 %v225, 7
    %v227 = vsub.s32 3, %v226
    %v228 = vrot.slane %v211, %v227
    %v233 = vmul.f32 %v209, %v216
    %v234 = vmul.f32 %v208, %v220
    %v235 = vmul.f32 %v207, %v224
    %v236 = vmul.f32 %v206, %v228
    %v241 = vrot.slane %v233, 4
    %v242 = vrot.slane %v234, 4
    %v243 = vrot.slane %v235, 4
    %v244 = vrot.slane %v236, 4
    %249 = vst [vmem:[#allocation2 + $0x20] sm:$0xf0] %v241
    %250 = vst [vmem:[#allocation2 + $0x28] sm:$0xf0] %v242
    %251 = vst [vmem:[#allocation2 + $0x30] sm:$0xf0] %v243
    %252 = vst [vmem:[#allocation2 + $0x38] sm:$0xf0] %v244
    %s253 = scalar_lea.vmem [#allocation4], 4
    %v254 = vld [vmem:[%s253] ss:$8 sm:$0xf]
    %v256 = vlaneseq
    %v257 = vshrl.u32 %v256, 7
    %v258 = vsub.s32 0, %v257
    %v259 = vrot.slane %v254, %v258
    %v260 = vlaneseq
    %v261 = vshrl.u32 %v260, 7
    %v262 = vsub.s32 1, %v261
    %v263 = vrot.slane %v254, %v262
    %v264 = vlaneseq
    %v265 = vshrl.u32 %v264, 7
    %v266 = vsub.s32 2, %v265
    %v267 = vrot.slane %v254, %v266
    %v268 = vlaneseq
    %v269 = vshrl.u32 %v268, 7
    %v270 = vsub.s32 3, %v269
    %v271 = vrot.slane %v254, %v270
    %v272 = vcombine.low %v259, %v263
    %v273 = vcombine.low %v267, %v271
    %v276 = vmul.f32 %v44, %v272
    %v277 = vmul.f32 %v45, %v273
    %v280 = vcombine.high %v276, %v276
    %v281 = vcombine.high %v277, %v277
    %284 = vst [vmem:[#allocation2 + $0x40] sm:$0xf] %v276
    %285 = vst [vmem:[#allocation2 + $0x48] sm:$0xf] %v280
    %286 = vst [vmem:[#allocation2 + $0x50] sm:$0xf] %v277
    %287 = vst [vmem:[#allocation2 + $0x58] sm:$0xf] %v281
    %288 = vrot.lane.b32.xlu0 %v44, 127
    %v289 = vpop.permute.xlu0 %288
    %290 = vrot.lane.b32.xlu0 %v48, 127
    %v291 = vpop.permute.xlu0 %290
    %292 = vrot.lane.b32.xlu0 %v45, 127
    %v293 = vpop.permute.xlu0 %292
    %294 = vrot.lane.b32.xlu0 %v49, 127
    %v295 = vpop.permute.xlu0 %294
    %vm296 = vcmp.lt.s32.totalorder %v61, 127
    %v297 = vsel %vm296, %v293, %v295
    %v298 = vsel %vm296, %v291, %v293
    %v299 = vsel %vm296, %v289, %v291
    %v300 = vsel %vm296, %v295, %v289
    %s301 = scalar_lea.vmem [#allocation4], 5
    %v302 = vld [vmem:[%s301] ss:$8 sm:$0xf]
    %v304 = vlaneseq
    %v305 = vshrl.u32 %v304, 7
    %v306 = vsub.s32 0, %v305
    %v307 = vrot.slane %v302, %v306
    %v308 = vlaneseq
    %v309 = vshrl.u32 %v308, 7
    %v310 = vsub.s32 1, %v309
    %v311 = vrot.slane %v302, %v310
    %v312 = vlaneseq
    %v313 = vshrl.u32 %v312, 7
    %v314 = vsub.s32 2, %v313
    %v315 = vrot.slane %v302, %v314
    %v316 = vlaneseq
    %v317 = vshrl.u32 %v316, 7
    %v318 = vsub.s32 3, %v317
    %v319 = vrot.slane %v302, %v318
    %v324 = vmul.f32 %v299, %v307
    %v325 = vmul.f32 %v298, %v311
    %v326 = vmul.f32 %v297, %v315
    %v327 = vmul.f32 %v300, %v319
    %v332 = vrot.slane %v324, 4
    %v333 = vrot.slane %v325, 4
    %v334 = vrot.slane %v326, 4
    %v335 = vrot.slane %v327, 4
    %340 = vst [vmem:[#allocation2 + $0x40] sm:$0xf0] %v332
    %341 = vst [vmem:[#allocation2 + $0x48] sm:$0xf0] %v333
    %342 = vst [vmem:[#allocation2 + $0x50] sm:$0xf0] %v334
    %343 = vst [vmem:[#allocation2 + $0x58] sm:$0xf0] %v335
    %344 = vrot.lane.b32.xlu0 %v44, 113
    %v345 = vpop.permute.xlu0 %344
    %346 = vrot.lane.b32.xlu0 %v48, 113
    %v347 = vpop.permute.xlu0 %346
    %348 = vrot.lane.b32.xlu0 %v45, 113
    %v349 = vpop.permute.xlu0 %348
    %350 = vrot.lane.b32.xlu0 %v49, 113
    %v351 = vpop.permute.xlu0 %350
    %vm352 = vcmp.lt.s32.totalorder %v61, 113
    %v353 = vsel %vm352, %v349, %v351
    %v354 = vsel %vm352, %v347, %v349
    %v355 = vsel %vm352, %v345, %v347
    %v356 = vsel %vm352, %v351, %v345
    %s357 = scalar_lea.vmem [#allocation4], 6
    %v358 = vld [vmem:[%s357] ss:$8 sm:$0xf]
    %v360 = vlaneseq
    %v361 = vshrl.u32 %v360, 7
    %v362 = vsub.s32 0, %v361
    %v363 = vrot.slane %v358, %v362
    %v364 = vlaneseq
    %v365 = vshrl.u32 %v364, 7
    %v366 = vsub.s32 1, %v365
    %v367 = vrot.slane %v358, %v366
    %v368 = vlaneseq
    %v369 = vshrl.u32 %v368, 7
    %v370 = vsub.s32 2, %v369
    %v371 = vrot.slane %v358, %v370
    %v372 = vlaneseq
    %v373 = vshrl.u32 %v372, 7
    %v374 = vsub.s32 3, %v373
    %v375 = vrot.slane %v358, %v374
    %v380 = vmul.f32 %v355, %v363
    %v381 = vmul.f32 %v354, %v367
    %v382 = vmul.f32 %v353, %v371
    %v383 = vmul.f32 %v356, %v375
    %384 = vst [vmem:[#allocation2 + $0x60] sm:$0xf] %v380
    %385 = vst [vmem:[#allocation2 + $0x68] sm:$0xf] %v381
    %386 = vst [vmem:[#allocation2 + $0x70] sm:$0xf] %v382
    %387 = vst [vmem:[#allocation2 + $0x78] sm:$0xf] %v383
    %388 = vrot.lane.b32.xlu0 %v44, 112
    %v389 = vpop.permute.xlu0 %388
    %390 = vrot.lane.b32.xlu0 %v48, 112
    %v391 = vpop.permute.xlu0 %390
    %392 = vrot.lane.b32.xlu0 %v45, 112
    %v393 = vpop.permute.xlu0 %392
    %394 = vrot.lane.b32.xlu0 %v49, 112
    %v395 = vpop.permute.xlu0 %394
    %vm396 = vcmp.lt.s32.totalorder %v61, 112
    %v397 = vsel %vm396, %v393, %v395
    %v398 = vsel %vm396, %v391, %v393
    %v399 = vsel %vm396, %v389, %v391
    %v400 = vsel %vm396, %v395, %v389
    %s401 = scalar_lea.vmem [#allocation4], 7
    %v402 = vld [vmem:[%s401] ss:$8 sm:$0xf]
    %v404 = vlaneseq
    %v405 = vshrl.u32 %v404, 7
    %v406 = vsub.s32 0, %v405
    %v407 = vrot.slane %v402, %v406
    %v408 = vlaneseq
    %v409 = vshrl.u32 %v408, 7
    %v410 = vsub.s32 1, %v409
    %v411 = vrot.slane %v402, %v410
    %v412 = vlaneseq
    %v413 = vshrl.u32 %v412, 7
    %v414 = vsub.s32 2, %v413
    %v415 = vrot.slane %v402, %v414
    %v416 = vlaneseq
    %v417 = vshrl.u32 %v416, 7
    %v418 = vsub.s32 3, %v417
    %v419 = vrot.slane %v402, %v418
    %v424 = vmul.f32 %v399, %v407
    %v425 = vmul.f32 %v398, %v411
    %v426 = vmul.f32 %v397, %v415
    %v427 = vmul.f32 %v400, %v419
    %v432 = vrot.slane %v424, 4
    %v433 = vrot.slane %v425, 4
    %v434 = vrot.slane %v426, 4
    %v435 = vrot.slane %v427, 4
    %440 = vst [vmem:[#allocation2 + $0x60] sm:$0xf0] %v432
    %441 = vst [vmem:[#allocation2 + $0x68] sm:$0xf0] %v433
    %442 = vst [vmem:[#allocation2 + $0x70] sm:$0xf0] %v434
    %443 = vst [vmem:[#allocation2 + $0x78] sm:$0xf0] %v435
    %444 = vrot.lane.b32.xlu0 %v44, 111
    %v445 = vpop.permute.xlu0 %444
    %446 = vrot.lane.b32.xlu0 %v48, 111
    %v447 = vpop.permute.xlu0 %446
    %448 = vrot.lane.b32.xlu0 %v45, 111
    %v449 = vpop.permute.xlu0 %448
    %450 = vrot.lane.b32.xlu0 %v49, 111
    %v451 = vpop.permute.xlu0 %450
    %vm452 = vcmp.lt.s32.totalorder %v61, 111
    %v453 = vsel %vm452, %v449, %v451
    %v454 = vsel %vm452, %v447, %v449
    %v455 = vsel %vm452, %v445, %v447
    %v456 = vsel %vm452, %v451, %v445
    %s457 = scalar_lea.vmem [#allocation4], 32
    %v458 = vld [vmem:[%s457] ss:$8 sm:$0xf]
    %v460 = vlaneseq
    %v461 = vshrl.u32 %v460, 7
    %v462 = vsub.s32 0, %v461
    %v463 = vrot.slane %v458, %v462
    %v464 = vlaneseq
    %v465 = vshrl.u32 %v464, 7
    %v466 = vsub.s32 1, %v465
    %v467 = vrot.slane %v458, %v466
    %v468 = vlaneseq
    %v469 = vshrl.u32 %v468, 7
    %v470 = vsub.s32 2, %v469
    %v471 = vrot.slane %v458, %v470
    %v472 = vlaneseq
    %v473 = vshrl.u32 %v472, 7
    %v474 = vsub.s32 3, %v473
    %v475 = vrot.slane %v458, %v474
    %v480 = vmul.f32 %v455, %v463
    %v481 = vmul.f32 %v454, %v467
    %v482 = vmul.f32 %v453, %v471
    %v483 = vmul.f32 %v456, %v475
    %484 = vst [vmem:[#allocation2 + $0x80] sm:$0xf] %v480
    %485 = vst [vmem:[#allocation2 + $0x88] sm:$0xf] %v481
    %486 = vst [vmem:[#allocation2 + $0x90] sm:$0xf] %v482
    %487 = vst [vmem:[#allocation2 + $0x98] sm:$0xf] %v483
    %v488 = vld [vmem:[%s1] sm:$0xff]
    %v489 = vld [vmem:[#allocation2] sm:$0xff]
    %v490 = vld [vmem:[#allocation2 + $0x8] sm:$0xff]
    %v491 = vld [vmem:[#allocation2 + $0x10] sm:$0xff]
    %v492 = vld [vmem:[#allocation2 + $0x18] sm:$0xff]
    %v493 = vld [vmem:[#allocation2 + $0x20] sm:$0xff]
    %v494 = vld [vmem:[#allocation2 + $0x28] sm:$0xff]
    %v495 = vld [vmem:[#allocation2 + $0x30] sm:$0xff]
    %v496 = vld [vmem:[#allocation2 + $0x38] sm:$0xff]
    %v497 = vld [vmem:[#allocation2 + $0x40] sm:$0xff]
    %v498 = vld [vmem:[#allocation2 + $0x48] sm:$0xff]
    %v499 = vld [vmem:[#allocation2 + $0x50] sm:$0xff]
    %v500 = vld [vmem:[#allocation2 + $0x58] sm:$0xff]
    %v501 = vld [vmem:[#allocation2 + $0x60] sm:$0xff]
    %v502 = vld [vmem:[#allocation2 + $0x68] sm:$0xff]
    %v503 = vld [vmem:[#allocation2 + $0x70] sm:$0xff]
    %v504 = vld [vmem:[#allocation2 + $0x78] sm:$0xff]
    %v505 = vld [vmem:[#allocation2 + $0x80] sm:$0xf]
    %v506 = vld [vmem:[#allocation2 + $0x88] sm:$0xf]
    %v507 = vld [vmem:[#allocation2 + $0x90] sm:$0xf]
    %v508 = vld [vmem:[#allocation2 + $0x98] sm:$0xf]
    %vm509 = vcmask 293888
    %v511 = vsel %vm509, %v488, 0
    %vm513 = vcmask 1043456
    %v515 = vsel %vm513, %v505, 0
    %v518 = vsel %vm513, %v506, 0
    %v521 = vsel %vm513, %v507, 0
    %v524 = vsel %vm513, %v508, 0
    %526 = vmatprep.subr.mxu0 %v490
    %527 = vmatpush1.msra.mxu0 %v489
    %528 = vmatprep.subr.mxu0 %v494
    %529 = vmatpush1.msra.mxu0 %v493
    %530 = vmatprep.subr.mxu0 %v498
    %531 = vmatpush1.msra.mxu0 %v497
    %532 = vmatprep.subr.mxu0 %v502
    %533 = vmatpush1.msra.mxu0 %v501
    %534 = vmatprep.subr.mxu0 %v518
    %535 = vmatpush1.msra.mxu0 %v515
    %536 = vmatprep.subr.mxu0 0.0
    %537 = vmatpush1.msra.mxu0 0.0
    %538 = vmatprep.subr.mxu0 0.0
    %539 = vmatpush1.msra.mxu0 0.0
    %540 = vmatprep.subr.mxu0 0.0
    %541 = vmatpush1.msra.mxu0 0.0
    %542 = vmatprep.subr.mxu0 0.0
    %543 = vmatpush1.msra.mxu0 0.0
    %544 = vmatprep.subr.mxu0 0.0
    %545 = vmatpush1.msra.mxu0 0.0
    %546 = vmatprep.subr.mxu0 0.0
    %547 = vmatpush1.msra.mxu0 0.0
    %548 = vmatprep.subr.mxu0 0.0
    %549 = vmatpush1.msra.mxu0 0.0
    %550 = vmatprep.subr.mxu0 0.0
    %551 = vmatpush1.msra.mxu0 0.0
    %552 = vmatprep.subr.mxu0 0.0
    %553 = vmatpush1.msra.mxu0 0.0
    %554 = vmatprep.subr.mxu0 0.0
    %555 = vmatpush1.msra.mxu0 0.0
    %556 = vmatprep.subr.mxu0 0.0
    %557 = vmatpush1.msra.mxu0 0.0
    %558 = vmatprep.subr.mxu0 0.0
    %559 = vmatpush1.msra.mxu0 0.0
    %560 = vmatprep.subr.mxu0 0.0
    %561 = vmatpush1.msra.mxu0 0.0
    %562 = vmatprep.subr.mxu0 0.0
    %563 = vmatpush1.msra.mxu0 0.0
    %564 = vmatprep.subr.mxu0 0.0
    %565 = vmatpush1.msra.mxu0 0.0
    %566 = vmatprep.subr.mxu0 0.0
    %567 = vmatpush1.msra.mxu0 0.0
    %568 = vmatprep.subr.mxu0 0.0
    %569 = vmatpush1.msra.mxu0 0.0
    %570 = vmatprep.subr.mxu0 0.0
    %571 = vmatpush1.msra.mxu0 0.0
    %572 = vmatprep.subr.mxu0 0.0
    %573 = vmatpush1.msra.mxu0 0.0
    %574 = vmatprep.subr.mxu0 0.0
    %575 = vmatpush1.msra.mxu0 0.0
    %576 = vmatprep.subr.mxu0 0.0
    %577 = vmatpush1.msra.mxu0 0.0
    %578 = vmatprep.subr.mxu0 0.0
    %579 = vmatpush1.msra.mxu0 0.0
    %580 = vmatprep.subr.mxu0 0.0
    %581 = vmatpush1.msra.mxu0 0.0
    %582 = vmatprep.subr.mxu0 0.0
    %583 = vmatpush1.msra.mxu0 0.0
    %584 = vmatprep.subr.mxu0 0.0
    %585 = vmatpush1.msra.mxu0 0.0
    %586 = vmatprep.subr.mxu0 0.0
    %587 = vmatpush1.msra.mxu0 0.0
    %588 = vmatprep.subr.mxu0 0.0
    %589 = vmatpush1.msra.mxu0 0.0
    %590 = vmatprep.mubr.f32.mxu0 0.0
    %591 = vmatmul.mubr.f32.gmra.mrb[0].mxu0 %v511
    %v592 = vpop.f32.mrb[0].mxu0
    %v593 = vadd.f32 0.0, %v592
    %v594 = vpop.f32.mrb[0].mxu0
    %v595 = vadd.f32 0.0, %v594
    %596 = vdwg.mxu0
    %597 = vmatprep.subr.mxu0 %v492
    %598 = vmatpush1.msra.mxu0 %v491
    %599 = vmatprep.subr.mxu0 %v496
    %600 = vmatpush1.msra.mxu0 %v495
    %601 = vmatprep.subr.mxu0 %v500
    %602 = vmatpush1.msra.mxu0 %v499
    %603 = vmatprep.subr.mxu0 %v504
    %604 = vmatpush1.msra.mxu0 %v503
    %605 = vmatprep.subr.mxu0 %v524
    %606 = vmatpush1.msra.mxu0 %v521
    %607 = vmatprep.subr.mxu0 0.0
    %608 = vmatpush1.msra.mxu0 0.0
    %609 = vmatprep.subr.mxu0 0.0
    %610 = vmatpush1.msra.mxu0 0.0
    %611 = vmatprep.subr.mxu0 0.0
    %612 = vmatpush1.msra.mxu0 0.0
    %613 = vmatprep.subr.mxu0 0.0
    %614 = vmatpush1.msra.mxu0 0.0
    %615 = vmatprep.subr.mxu0 0.0
    %616 = vmatpush1.msra.mxu0 0.0
    %617 = vmatprep.subr.mxu0 0.0
    %618 = vmatpush1.msra.mxu0 0.0
    %619 = vmatprep.subr.mxu0 0.0
    %620 = vmatpush1.msra.mxu0 0.0
    %621 = vmatprep.subr.mxu0 0.0
    %622 = vmatpush1.msra.mxu0 0.0
    %623 = vmatprep.subr.mxu0 0.0
    %624 = vmatpush1.msra.mxu0 0.0
    %625 = vmatprep.subr.mxu0 0.0
    %626 = vmatpush1.msra.mxu0 0.0
    %627 = vmatprep.subr.mxu0 0.0
    %628 = vmatpush1.msra.mxu0 0.0
    %629 = vmatprep.subr.mxu0 0.0
    %630 = vmatpush1.msra.mxu0 0.0
    %631 = vmatprep.subr.mxu0 0.0
    %632 = vmatpush1.msra.mxu0 0.0
    %633 = vmatprep.subr.mxu0 0.0
    %634 = vmatpush1.msra.mxu0 0.0
    %635 = vmatprep.subr.mxu0 0.0
    %636 = vmatpush1.msra.mxu0 0.0
    %637 = vmatprep.subr.mxu0 0.0
    %638 = vmatpush1.msra.mxu0 0.0
    %639 = vmatprep.subr.mxu0 0.0
    %640 = vmatpush1.msra.mxu0 0.0
    %641 = vmatprep.subr.mxu0 0.0
    %642 = vmatpush1.msra.mxu0 0.0
    %643 = vmatprep.subr.mxu0 0.0
    %644 = vmatpush1.msra.mxu0 0.0
    %645 = vmatprep.subr.mxu0 0.0
    %646 = vmatpush1.msra.mxu0 0.0
    %647 = vmatprep.subr.mxu0 0.0
    %648 = vmatpush1.msra.mxu0 0.0
    %649 = vmatprep.subr.mxu0 0.0
    %650 = vmatpush1.msra.mxu0 0.0
    %651 = vmatprep.subr.mxu0 0.0
    %652 = vmatpush1.msra.mxu0 0.0
    %653 = vmatprep.subr.mxu0 0.0
    %654 = vmatpush1.msra.mxu0 0.0
    %655 = vmatprep.subr.mxu0 0.0
    %656 = vmatpush1.msra.mxu0 0.0
    %657 = vmatprep.subr.mxu0 0.0
    %658 = vmatpush1.msra.mxu0 0.0
    %659 = vmatprep.subr.mxu0 0.0
    %660 = vmatpush1.msra.mxu0 0.0
    %661 = vmatprep.mubr.f32.mxu0 0.0
    %662 = vmatmul.mubr.f32.gmra.mrb[0].mxu0 %v511
    %v663 = vpop.f32.mrb[0].mxu0
    %v664 = vadd.f32 0.0, %v663
    %v665 = vpop.f32.mrb[0].mxu0
    %v666 = vadd.f32 0.0, %v665
    %667 = vdwg.mxu0
    %v668 = vld [vmem:[%s4] sm:$0xff]
    %v669 = vld [vmem:[%s5] sm:$0xff]
    %v670 = vadd.f32 %v593, %v595
    %v671 = vadd.f32 %v670, %v664
    %v672 = vadd.f32 %v671, %v666
    %673 = vadd.xlane.f32.xlu0 %v672
    %v674 = vpop.xlane.xlu0 %673
    %v675 = vmul.f32 %v593, %v593
    %v676 = vmul.f32 %v595, %v595
    %v677 = vmul.f32 %v664, %v664
    %v678 = vmul.f32 %v666, %v666
    %v679 = vadd.f32 %v675, %v676
    %v680 = vadd.f32 %v679, %v677
    %v681 = vadd.f32 %v680, %v678
    %682 = vadd.xlane.f32.xlu0 %v681
    %v683 = vpop.xlane.xlu0 %682
    %v684 = vmul.f32 %v674, 0.001953125
    %v685 = vmul.f32 %v683, 0.001953125
    %v686 = vmul.f32 %v684, %v684
    %v687 = vsub.f32 %v685, %v686
    %v688 = vsub.f32 %v593, %v684
    %v689 = vsub.f32 %v595, %v684
    %v690 = vsub.f32 %v664, %v684
    %v691 = vsub.f32 %v666, %v684
    %v692 = vadd.f32 %v687, 1e-05
    %v693 = vrsqrt.pop %v692
    %v694 = vmul.f32 %v688, %v693
    %v695 = vmul.f32 %v689, %v693
    %v696 = vmul.f32 %v690, %v693
    %v697 = vmul.f32 %v691, %v693
    %699 = vset.pattern.permute.xlu0 0
    %700 = vperm.xlu0 %699, %v668
    %v701 = vpop.permute.xlu0 %700
    %v703 = vmul.f32 %v694, %v701
    %v704 = vmul.f32 %v695, %v701
    %v705 = vmul.f32 %v696, %v701
    %v706 = vmul.f32 %v697, %v701
    %708 = vset.pattern.permute.xlu0 0
    %709 = vperm.xlu0 %708, %v669
    %v710 = vpop.permute.xlu0 %709
    %v712 = vadd.f32 %v703, %v710
    %v713 = vadd.f32 %v704, %v710
    %v714 = vadd.f32 %v705, %v710
    %v715 = vadd.f32 %v706, %v710
    %v716 = vmax.f32 %v712, 0.0
    %v717 = vmax.f32 %v713, 0.0
    %v718 = vmax.f32 %v714, 0.0
    %v719 = vmax.f32 %v715, 0.0
    %720 = vrot.lane.b32.xlu0 %v716, 17
    %v721 = vpop.permute.xlu0 %720
    %722 = vrot.lane.b32.xlu0 %v717, 17
    %v723 = vpop.permute.xlu0 %722
    %724 = vrot.lane.b32.xlu0 %v718, 17
    %v725 = vpop.permute.xlu0 %724
    %726 = vrot.lane.b32.xlu0 %v719, 17
    %v727 = vpop.permute.xlu0 %726
    %v728 = vsel %vm62, %v725, %v727
    %v729 = vsel %vm62, %v723, %v725
    %v730 = vsel %vm62, %v721, %v723
    %v731 = vsel %vm62, %v727, %v721
    %v732 = vld [vmem:[#allocation4] ss:$8 sm:$0xf]
    %v734 = vlaneseq
    %v735 = vshrl.u32 %v734, 7
    %v736 = vsub.s32 0, %v735
    %v737 = vrot.slane %v732, %v736
    %v738 = vlaneseq
    %v739 = vshrl.u32 %v738, 7
    %v740 = vsub.s32 1, %v739
    %v741 = vrot.slane %v732, %v740
    %v742 = vlaneseq
    %v743 = vshrl.u32 %v742, 7
    %v744 = vsub.s32 2, %v743
    %v745 = vrot.slane %v732, %v744
    %v746 = vlaneseq
    %v747 = vshrl.u32 %v746, 7
    %v748 = vsub.s32 3, %v747
    %v749 = vrot.slane %v732, %v748
    %v754 = vmul.f32 %v731, %v737
    %v755 = vmul.f32 %v730, %v741
    %v756 = vmul.f32 %v729, %v745
    %v757 = vmul.f32 %v728, %v749
    %758 = vst [vmem:[#allocation3] sm:$0xff] %v754
    %759 = vst [vmem:[#allocation3 + $0x8] sm:$0xff] %v755
    %760 = vst [vmem:[#allocation3 + $0x10] sm:$0xff] %v756
    %761 = vst [vmem:[#allocation3 + $0x18] sm:$0xff] %v757
    %762 = vrot.lane.b32.xlu0 %v716, 16
    %v763 = vpop.permute.xlu0 %762
    %764 = vrot.lane.b32.xlu0 %v717, 16
    %v765 = vpop.permute.xlu0 %764
    %766 = vrot.lane.b32.xlu0 %v718, 16
    %v767 = vpop.permute.xlu0 %766
    %768 = vrot.lane.b32.xlu0 %v719, 16
    %v769 = vpop.permute.xlu0 %768
    %v770 = vsel %vm105, %v767, %v769
    %v771 = vsel %vm105, %v765, %v767
    %v772 = vsel %vm105, %v763, %v765
    %v773 = vsel %vm105, %v769, %v763
    %v774 = vld [vmem:[%s110] ss:$8 sm:$0xf]
    %v776 = vlaneseq
    %v777 = vshrl.u32 %v776, 7
    %v778 = vsub.s32 0, %v777
    %v779 = vrot.slane %v774, %v778
    %v780 = vlaneseq
    %v781 = vshrl.u32 %v780, 7
    %v782 = vsub.s32 1, %v781
    %v783 = vrot.slane %v774, %v782
    %v784 = vlaneseq
    %v785 = vshrl.u32 %v784, 7
    %v786 = vsub.s32 2, %v785
    %v787 = vrot.slane %v774, %v786
    %v788 = vlaneseq
    %v789 = vshrl.u32 %v788, 7
    %v790 = vsub.s32 3, %v789
    %v791 = vrot.slane %v774, %v790
    %v796 = vmul.f32 %v773, %v779
    %v797 = vmul.f32 %v772, %v783
    %v798 = vmul.f32 %v771, %v787
    %v799 = vmul.f32 %v770, %v791
    %800 = vst [vmem:[#allocation3 + $0x20] sm:$0xff] %v796
    %801 = vst [vmem:[#allocation3 + $0x28] sm:$0xff] %v797
    %802 = vst [vmem:[#allocation3 + $0x30] sm:$0xff] %v798
    %803 = vst [vmem:[#allocation3 + $0x38] sm:$0xff] %v799
    %804 = vrot.lane.b32.xlu0 %v716, 15
    %v805 = vpop.permute.xlu0 %804
    %806 = vrot.lane.b32.xlu0 %v717, 15
    %v807 = vpop.permute.xlu0 %806
    %808 = vrot.lane.b32.xlu0 %v718, 15
    %v809 = vpop.permute.xlu0 %808
    %810 = vrot.lane.b32.xlu0 %v719, 15
    %v811 = vpop.permute.xlu0 %810
    %v812 = vsel %vm161, %v809, %v811
    %v813 = vsel %vm161, %v807, %v809
    %v814 = vsel %vm161, %v805, %v807
    %v815 = vsel %vm161, %v811, %v805
    %v816 = vld [vmem:[%s166] ss:$8 sm:$0xf]
    %v818 = vlaneseq
    %v819 = vshrl.u32 %v818, 7
    %v820 = vsub.s32 0, %v819
    %v821 = vrot.slane %v816, %v820
    %v822 = vlaneseq
    %v823 = vshrl.u32 %v822, 7
    %v824 = vsub.s32 1, %v823
    %v825 = vrot.slane %v816, %v824
    %v826 = vlaneseq
    %v827 = vshrl.u32 %v826, 7
    %v828 = vsub.s32 2, %v827
    %v829 = vrot.slane %v816, %v828
    %v830 = vlaneseq
    %v831 = vshrl.u32 %v830, 7
    %v832 = vsub.s32 3, %v831
    %v833 = vrot.slane %v816, %v832
    %v838 = vmul.f32 %v815, %v821
    %v839 = vmul.f32 %v814, %v825
    %v840 = vmul.f32 %v813, %v829
    %v841 = vmul.f32 %v812, %v833
    %842 = vst [vmem:[#allocation3 + $0x40] sm:$0xff] %v838
    %843 = vst [vmem:[#allocation3 + $0x48] sm:$0xff] %v839
    %844 = vst [vmem:[#allocation3 + $0x50] sm:$0xff] %v840
    %845 = vst [vmem:[#allocation3 + $0x58] sm:$0xff] %v841
    %846 = vrot.lane.b32.xlu0 %v716, 1
    %v847 = vpop.permute.xlu0 %846
    %848 = vrot.lane.b32.xlu0 %v717, 1
    %v849 = vpop.permute.xlu0 %848
    %850 = vrot.lane.b32.xlu0 %v718, 1
    %v851 = vpop.permute.xlu0 %850
    %852 = vrot.lane.b32.xlu0 %v719, 1
    %v853 = vpop.permute.xlu0 %852
    %v854 = vsel %vm205, %v851, %v853
    %v855 = vsel %vm205, %v849, %v851
    %v856 = vsel %vm205, %v847, %v849
    %v857 = vsel %vm205, %v853, %v847
    %v858 = vld [vmem:[%s210] ss:$8 sm:$0xf]
    %v860 = vlaneseq
    %v861 = vshrl.u32 %v860, 7
    %v862 = vsub.s32 0, %v861
    %v863 = vrot.slane %v858, %v862
    %v864 = vlaneseq
    %v865 = vshrl.u32 %v864, 7
    %v866 = vsub.s32 1, %v865
    %v867 = vrot.slane %v858, %v866
    %v868 = vlaneseq
    %v869 = vshrl.u32 %v868, 7
    %v870 = vsub.s32 2, %v869
    %v871 = vrot.slane %v858, %v870
    %v872 = vlaneseq
    %v873 = vshrl.u32 %v872, 7
    %v874 = vsub.s32 3, %v873
    %v875 = vrot.slane %v858, %v874
    %v880 = vmul.f32 %v857, %v863
    %v881 = vmul.f32 %v856, %v867
    %v882 = vmul.f32 %v855, %v871
    %v883 = vmul.f32 %v854, %v875
    %884 = vst [vmem:[#allocation3 + $0x60] sm:$0xff] %v880
    %885 = vst [vmem:[#allocation3 + $0x68] sm:$0xff] %v881
    %886 = vst [vmem:[#allocation3 + $0x70] sm:$0xff] %v882
    %887 = vst [vmem:[#allocation3 + $0x78] sm:$0xff] %v883
    %v888 = vld [vmem:[%s253] ss:$8 sm:$0xf]
    %v890 = vlaneseq
    %v891 = vshrl.u32 %v890, 7
    %v892 = vsub.s32 0, %v891
    %v893 = vrot.slane %v888, %v892
    %v894 = vlaneseq
    %v895 = vshrl.u32 %v894, 7
    %v896 = vsub.s32 1, %v895
    %v897 = vrot.slane %v888, %v896
    %v898 = vlaneseq
    %v899 = vshrl.u32 %v898, 7
    %v900 = vsub.s32 2, %v899
    %v901 = vrot.slane %v888, %v900
    %v902 = vlaneseq
    %v903 = vshrl.u32 %v902, 7
    %v904 = vsub.s32 3, %v903
    %v905 = vrot.slane %v888, %v904
    %v910 = vmul.f32 %v716, %v893
    %v911 = vmul.f32 %v717, %v897
    %v912 = vmul.f32 %v718, %v901
    %v913 = vmul.f32 %v719, %v905
    %914 = vst [vmem:[#allocation3 + $0x80] sm:$0xff] %v910
    %915 = vst [vmem:[#allocation3 + $0x88] sm:$0xff] %v911
    %916 = vst [vmem:[#allocation3 + $0x90] sm:$0xff] %v912
    %917 = vst [vmem:[#allocation3 + $0x98] sm:$0xff] %v913
    %918 = vrot.lane.b32.xlu0 %v716, 127
    %v919 = vpop.permute.xlu0 %918
    %920 = vrot.lane.b32.xlu0 %v717, 127
    %v921 = vpop.permute.xlu0 %920
    %922 = vrot.lane.b32.xlu0 %v718, 127
    %v923 = vpop.permute.xlu0 %922
    %924 = vrot.lane.b32.xlu0 %v719, 127
    %v925 = vpop.permute.xlu0 %924
    %v926 = vsel %vm296, %v923, %v925
    %v927 = vsel %vm296, %v921, %v923
    %v928 = vsel %vm296, %v919, %v921
    %v929 = vsel %vm296, %v925, %v919
    %v930 = vld [vmem:[%s301] ss:$8 sm:$0xf]
    %v932 = vlaneseq
    %v933 = vshrl.u32 %v932, 7
    %v934 = vsub.s32 0, %v933
    %v935 = vrot.slane %v930, %v934
    %v936 = vlaneseq
    %v937 = vshrl.u32 %v936, 7
    %v938 = vsub.s32 1, %v937
    %v939 = vrot.slane %v930, %v938
    %v940 = vlaneseq
    %v941 = vshrl.u32 %v940, 7
    %v942 = vsub.s32 2, %v941
    %v943 = vrot.slane %v930, %v942
    %v944 = vlaneseq
    %v945 = vshrl.u32 %v944, 7
    %v946 = vsub.s32 3, %v945
    %v947 = vrot.slane %v930, %v946
    %v952 = vmul.f32 %v928, %v935
    %v953 = vmul.f32 %v927, %v939
    %v954 = vmul.f32 %v926, %v943
    %v955 = vmul.f32 %v929, %v947
    %956 = vst [vmem:[#allocation3 + $0xa0] sm:$0xff] %v952
    %957 = vst [vmem:[#allocation3 + $0xa8] sm:$0xff] %v953
    %958 = vst [vmem:[#allocation3 + $0xb0] sm:$0xff] %v954
    %959 = vst [vmem:[#allocation3 + $0xb8] sm:$0xff] %v955
    %960 = vrot.lane.b32.xlu0 %v716, 113
    %v961 = vpop.permute.xlu0 %960
    %962 = vrot.lane.b32.xlu0 %v717, 113
    %v963 = vpop.permute.xlu0 %962
    %964 = vrot.lane.b32.xlu0 %v718, 113
    %v965 = vpop.permute.xlu0 %964
    %966 = vrot.lane.b32.xlu0 %v719, 113
    %v967 = vpop.permute.xlu0 %966
    %v968 = vsel %vm352, %v965, %v967
    %v969 = vsel %vm352, %v963, %v965
    %v970 = vsel %vm352, %v961, %v963
    %v971 = vsel %vm352, %v967, %v961
    %v972 = vld [vmem:[%s357] ss:$8 sm:$0xf]
    %v974 = vlaneseq
    %v975 = vshrl.u32 %v974, 7
    %v976 = vsub.s32 0, %v975
    %v977 = vrot.slane %v972, %v976
    %v978 = vlaneseq
    %v979 = vshrl.u32 %v978, 7
    %v980 = vsub.s32 1, %v979
    %v981 = vrot.slane %v972, %v980
    %v982 = vlaneseq
    %v983 = vshrl.u32 %v982, 7
    %v984 = vsub.s32 2, %v983
    %v985 = vrot.slane %v972, %v984
    %v986 = vlaneseq
    %v987 = vshrl.u32 %v986, 7
    %v988 = vsub.s32 3, %v987
    %v989 = vrot.slane %v972, %v988
    %v994 = vmul.f32 %v970, %v977
    %v995 = vmul.f32 %v969, %v981
    %v996 = vmul.f32 %v968, %v985
    %v997 = vmul.f32 %v971, %v989
    %998 = vst [vmem:[#allocation3 + $0xc0] sm:$0xff] %v994
    %999 = vst [vmem:[#allocation3 + $0xc8] sm:$0xff] %v995
    %1000 = vst [vmem:[#allocation3 + $0xd0] sm:$0xff] %v996
    %1001 = vst [vmem:[#allocation3 + $0xd8] sm:$0xff] %v997
    %1002 = vrot.lane.b32.xlu0 %v716, 112
    %v1003 = vpop.permute.xlu0 %1002
    %1004 = vrot.lane.b32.xlu0 %v717, 112
    %v1005 = vpop.permute.xlu0 %1004
    %1006 = vrot.lane.b32.xlu0 %v718, 112
    %v1007 = vpop.permute.xlu0 %1006
    %1008 = vrot.lane.b32.xlu0 %v719, 112
    %v1009 = vpop.permute.xlu0 %1008
    %v1010 = vsel %vm396, %v1007, %v1009
    %v1011 = vsel %vm396, %v1005, %v1007
    %v1012 = vsel %vm396, %v1003, %v1005
    %v1013 = vsel %vm396, %v1009, %v1003
    %v1014 = vld [vmem:[%s401] ss:$8 sm:$0xf]
    %v1016 = vlaneseq
    %v1017 = vshrl.u32 %v1016, 7
    %v1018 = vsub.s32 0, %v1017
    %v1019 = vrot.slane %v1014, %v1018
    %v1020 = vlaneseq
    %v1021 = vshrl.u32 %v1020, 7
    %v1022 = vsub.s32 1, %v1021
    %v1023 = vrot.slane %v1014, %v1022
    %v1024 = vlaneseq
    %v1025 = vshrl.u32 %v1024, 7
    %v1026 = vsub.s32 2, %v1025
    %v1027 = vrot.slane %v1014, %v1026
    %v1028 = vlaneseq
    %v1029 = vshrl.u32 %v1028, 7
    %v1030 = vsub.s32 3, %v1029
    %v1031 = vrot.slane %v1014, %v1030
    %v1036 = vmul.f32 %v1012, %v1019
    %v1037 = vmul.f32 %v1011, %v1023
    %v1038 = vmul.f32 %v1010, %v1027
    %v1039 = vmul.f32 %v1013, %v1031
    %1040 = vst [vmem:[#allocation3 + $0xe0] sm:$0xff] %v1036
    %1041 = vst [vmem:[#allocation3 + $0xe8] sm:$0xff] %v1037
    %1042 = vst [vmem:[#allocation3 + $0xf0] sm:$0xff] %v1038
    %1043 = vst [vmem:[#allocation3 + $0xf8] sm:$0xff] %v1039
    %1044 = vrot.lane.b32.xlu0 %v716, 111
    %v1045 = vpop.permute.xlu0 %1044
    %1046 = vrot.lane.b32.xlu0 %v717, 111
    %v1047 = vpop.permute.xlu0 %1046
    %1048 = vrot.lane.b32.xlu0 %v718, 111
    %v1049 = vpop.permute.xlu0 %1048
    %1050 = vrot.lane.b32.xlu0 %v719, 111
    %v1051 = vpop.permute.xlu0 %1050
    %v1052 = vsel %vm452, %v1049, %v1051
    %v1053 = vsel %vm452, %v1047, %v1049
    %v1054 = vsel %vm452, %v1045, %v1047
    %v1055 = vsel %vm452, %v1051, %v1045
    %v1056 = vld [vmem:[%s457] ss:$8 sm:$0xf]
    %v1058 = vlaneseq
    %v1059 = vshrl.u32 %v1058, 7
    %v1060 = vsub.s32 0, %v1059
    %v1061 = vrot.slane %v1056, %v1060
    %v1062 = vlaneseq
    %v1063 = vshrl.u32 %v1062, 7
    %v1064 = vsub.s32 1, %v1063
    %v1065 = vrot.slane %v1056, %v1064
    %v1066 = vlaneseq
    %v1067 = vshrl.u32 %v1066, 7
    %v1068 = vsub.s32 2, %v1067
    %v1069 = vrot.slane %v1056, %v1068
    %v1070 = vlaneseq
    %v1071 = vshrl.u32 %v1070, 7
    %v1072 = vsub.s32 3, %v1071
    %v1073 = vrot.slane %v1056, %v1072
    %v1078 = vmul.f32 %v1054, %v1061
    %v1079 = vmul.f32 %v1053, %v1065
    %v1080 = vmul.f32 %v1052, %v1069
    %v1081 = vmul.f32 %v1055, %v1073
    %1082 = vst [vmem:[#allocation3 + $0x100] sm:$0xff] %v1078
    %1083 = vst [vmem:[#allocation3 + $0x108] sm:$0xff] %v1079
    %1084 = vst [vmem:[#allocation3 + $0x110] sm:$0xff] %v1080
    %1085 = vst [vmem:[#allocation3 + $0x118] sm:$0xff] %v1081
    %v1086 = vld [vmem:[%s2] sm:$0xf]
    %v1087 = vld [vmem:[#allocation3] sm:$0xff]
    %v1088 = vld [vmem:[#allocation3 + $0x8] sm:$0xff]
    %v1089 = vld [vmem:[#allocation3 + $0x10] sm:$0xff]
    %v1090 = vld [vmem:[#allocation3 + $0x18] sm:$0xff]
    %v1091 = vld [vmem:[#allocation3 + $0x20] sm:$0xff]
    %v1092 = vld [vmem:[#allocation3 + $0x28] sm:$0xff]
    %v1093 = vld [vmem:[#allocation3 + $0x30] sm:$0xff]
    %v1094 = vld [vmem:[#allocation3 + $0x38] sm:$0xff]
    %v1095 = vld [vmem:[#allocation3 + $0x40] sm:$0xff]
    %v1096 = vld [vmem:[#allocation3 + $0x48] sm:$0xff]
    %v1097 = vld [vmem:[#allocation3 + $0x50] sm:$0xff]
    %v1098 = vld [vmem:[#allocation3 + $0x58] sm:$0xff]
    %v1099 = vld [vmem:[#allocation3 + $0x60] sm:$0xff]
    %v1100 = vld [vmem:[#allocation3 + $0x68] sm:$0xff]
    %v1101 = vld [vmem:[#allocation3 + $0x70] sm:$0xff]
    %v1102 = vld [vmem:[#allocation3 + $0x78] sm:$0xff]
    %v1103 = vld [vmem:[#allocation3 + $0x80] sm:$0xff]
    %v1104 = vld [vmem:[#allocation3 + $0x88] sm:$0xff]
    %v1105 = vld [vmem:[#allocation3 + $0x90] sm:$0xff]
    %v1106 = vld [vmem:[#allocation3 + $0x98] sm:$0xff]
    %v1107 = vld [vmem:[#allocation3 + $0xa0] sm:$0xff]
    %v1108 = vld [vmem:[#allocation3 + $0xa8] sm:$0xff]
    %v1109 = vld [vmem:[#allocation3 + $0xb0] sm:$0xff]
    %v1110 = vld [vmem:[#allocation3 + $0xb8] sm:$0xff]
    %v1111 = vld [vmem:[#allocation3 + $0xc0] sm:$0xff]
    %v1112 = vld [vmem:[#allocation3 + $0xc8] sm:$0xff]
    %v1113 = vld [vmem:[#allocation3 + $0xd0] sm:$0xff]
    %v1114 = vld [vmem:[#allocation3 + $0xd8] sm:$0xff]
    %v1115 = vld [vmem:[#allocation3 + $0xe0] sm:$0xff]
    %v1116 = vld [vmem:[#allocation3 + $0xe8] sm:$0xff]
    %v1117 = vld [vmem:[#allocation3 + $0xf0] sm:$0xff]
    %v1118 = vld [vmem:[#allocation3 + $0xf8] sm:$0xff]
    %v1119 = vld [vmem:[#allocation3 + $0x100] sm:$0xff]
    %v1120 = vld [vmem:[#allocation3 + $0x108] sm:$0xff]
    %v1121 = vld [vmem:[#allocation3 + $0x110] sm:$0xff]
    %v1122 = vld [vmem:[#allocation3 + $0x118] sm:$0xff]
    %vm1123 = vcmask 588800
    %v1125 = vsel %vm1123, %v1086, 0
    %1127 = vmatprep.subr.mxu0 %v1088
    %1128 = vmatpush1.msra.mxu0 %v1087
    %1129 = vmatprep.subr.mxu0 %v1092
    %1130 = vmatpush1.msra.mxu0 %v1091
    %1131 = vmatprep.subr.mxu0 %v1096
    %1132 = vmatpush1.msra.mxu0 %v1095
    %1133 = vmatprep.subr.mxu0 %v1100
    %1134 = vmatpush1.msra.mxu0 %v1099
    %1135 = vmatprep.subr.mxu0 %v1104
    %1136 = vmatpush1.msra.mxu0 %v1103
    %1137 = vmatprep.subr.mxu0 %v1108
    %1138 = vmatpush1.msra.mxu0 %v1107
    %1139 = vmatprep.subr.mxu0 %v1112
    %1140 = vmatpush1.msra.mxu0 %v1111
    %1141 = vmatprep.subr.mxu0 %v1116
    %1142 = vmatpush1.msra.mxu0 %v1115
    %1143 = vmatprep.subr.mxu0 %v1120
    %1144 = vmatpush1.msra.mxu0 %v1119
    %1145 = vmatprep.subr.mxu0 0.0
    %1146 = vmatpush1.msra.mxu0 0.0
    %1147 = vmatprep.subr.mxu0 0.0
    %1148 = vmatpush1.msra.mxu0 0.0
    %1149 = vmatprep.subr.mxu0 0.0
    %1150 = vmatpush1.msra.mxu0 0.0
    %1151 = vmatprep.subr.mxu0 0.0
    %1152 = vmatpush1.msra.mxu0 0.0
    %1153 = vmatprep.subr.mxu0 0.0
    %1154 = vmatpush1.msra.mxu0 0.0
    %1155 = vmatprep.subr.mxu0 0.0
    %1156 = vmatpush1.msra.mxu0 0.0
    %1157 = vmatprep.subr.mxu0 0.0
    %1158 = vmatpush1.msra.mxu0 0.0
    %1159 = vmatprep.subr.mxu0 0.0
    %1160 = vmatpush1.msra.mxu0 0.0
    %1161 = vmatprep.subr.mxu0 0.0
    %1162 = vmatpush1.msra.mxu0 0.0
    %1163 = vmatprep.subr.mxu0 0.0
    %1164 = vmatpush1.msra.mxu0 0.0
    %1165 = vmatprep.subr.mxu0 0.0
    %1166 = vmatpush1.msra.mxu0 0.0
    %1167 = vmatprep.subr.mxu0 0.0
    %1168 = vmatpush1.msra.mxu0 0.0
    %1169 = vmatprep.subr.mxu0 0.0
    %1170 = vmatpush1.msra.mxu0 0.0
    %1171 = vmatprep.subr.mxu0 0.0
    %1172 = vmatpush1.msra.mxu0 0.0
    %1173 = vmatprep.subr.mxu0 0.0
    %1174 = vmatpush1.msra.mxu0 0.0
    %1175 = vmatprep.subr.mxu0 0.0
    %1176 = vmatpush1.msra.mxu0 0.0
    %1177 = vmatprep.subr.mxu0 0.0
    %1178 = vmatpush1.msra.mxu0 0.0
    %1179 = vmatprep.subr.mxu0 0.0
    %1180 = vmatpush1.msra.mxu0 0.0
    %1181 = vmatprep.subr.mxu0 0.0
    %1182 = vmatpush1.msra.mxu0 0.0
    %1183 = vmatprep.subr.mxu0 0.0
    %1184 = vmatpush1.msra.mxu0 0.0
    %1185 = vmatprep.subr.mxu0 0.0
    %1186 = vmatpush1.msra.mxu0 0.0
    %1187 = vmatprep.subr.mxu0 0.0
    %1188 = vmatpush1.msra.mxu0 0.0
    %1189 = vmatprep.subr.mxu0 0.0
    %1190 = vmatpush1.msra.mxu0 0.0
    %1191 = vmatprep.mubr.f32.mxu0 0.0
    %1192 = vmatmul.mubr.f32.gmra.mrb[0].mxu0 %v1125
    %v1193 = vpop.f32.mrb[0].mxu0
    %v1194 = vadd.f32 0.0, %v1193
    %v1195 = vpop.f32.mrb[0].mxu0
    %v1196 = vadd.f32 0.0, %v1195
    %1197 = vdwg.mxu0
    %1198 = vmatprep.subr.mxu0 %v1090
    %1199 = vmatpush1.msra.mxu0 %v1089
    %1200 = vmatprep.subr.mxu0 %v1094
    %1201 = vmatpush1.msra.mxu0 %v1093
    %1202 = vmatprep.subr.mxu0 %v1098
    %1203 = vmatpush1.msra.mxu0 %v1097
    %1204 = vmatprep.subr.mxu0 %v1102
    %1205 = vmatpush1.msra.mxu0 %v1101
    %1206 = vmatprep.subr.mxu0 %v1106
    %1207 = vmatpush1.msra.mxu0 %v1105
    %1208 = vmatprep.subr.mxu0 %v1110
    %1209 = vmatpush1.msra.mxu0 %v1109
    %1210 = vmatprep.subr.mxu0 %v1114
    %1211 = vmatpush1.msra.mxu0 %v1113
    %1212 = vmatprep.subr.mxu0 %v1118
    %1213 = vmatpush1.msra.mxu0 %v1117
    %1214 = vmatprep.subr.mxu0 %v1122
    %1215 = vmatpush1.msra.mxu0 %v1121
    %1216 = vmatprep.subr.mxu0 0.0
    %1217 = vmatpush1.msra.mxu0 0.0
    %1218 = vmatprep.subr.mxu0 0.0
    %1219 = vmatpush1.msra.mxu0 0.0
    %1220 = vmatprep.subr.mxu0 0.0
    %1221 = vmatpush1.msra.mxu0 0.0
    %1222 = vmatprep.subr.mxu0 0.0
    %1223 = vmatpush1.msra.mxu0 0.0
    %1224 = vmatprep.subr.mxu0 0.0
    %1225 = vmatpush1.msra.mxu0 0.0
    %1226 = vmatprep.subr.mxu0 0.0
    %1227 = vmatpush1.msra.mxu0 0.0
    %1228 = vmatprep.subr.mxu0 0.0
    %1229 = vmatpush1.msra.mxu0 0.0
    %1230 = vmatprep.subr.mxu0 0.0
    %1231 = vmatpush1.msra.mxu0 0.0
    %1232 = vmatprep.subr.mxu0 0.0
    %1233 = vmatpush1.msra.mxu0 0.0
    %1234 = vmatprep.subr.mxu0 0.0
    %1235 = vmatpush1.msra.mxu0 0.0
    %1236 = vmatprep.subr.mxu0 0.0
    %1237 = vmatpush1.msra.mxu0 0.0
    %1238 = vmatprep.subr.mxu0 0.0
    %1239 = vmatpush1.msra.mxu0 0.0
    %1240 = vmatprep.subr.mxu0 0.0
    %1241 = vmatpush1.msra.mxu0 0.0
    %1242 = vmatprep.subr.mxu0 0.0
    %1243 = vmatpush1.msra.mxu0 0.0
    %1244 = vmatprep.subr.mxu0 0.0
    %1245 = vmatpush1.msra.mxu0 0.0
    %1246 = vmatprep.subr.mxu0 0.0
    %1247 = vmatpush1.msra.mxu0 0.0
    %1248 = vmatprep.subr.mxu0 0.0
    %1249 = vmatpush1.msra.mxu0 0.0
    %1250 = vmatprep.subr.mxu0 0.0
    %1251 = vmatpush1.msra.mxu0 0.0
    %1252 = vmatprep.subr.mxu0 0.0
    %1253 = vmatpush1.msra.mxu0 0.0
    %1254 = vmatprep.subr.mxu0 0.0
    %1255 = vmatpush1.msra.mxu0 0.0
    %1256 = vmatprep.subr.mxu0 0.0
    %1257 = vmatpush1.msra.mxu0 0.0
    %1258 = vmatprep.subr.mxu0 0.0
    %1259 = vmatpush1.msra.mxu0 0.0
    %1260 = vmatprep.subr.mxu0 0.0
    %1261 = vmatpush1.msra.mxu0 0.0
    %1262 = vmatprep.mubr.f32.mxu0 0.0
    %1263 = vmatmul.mubr.f32.gmra.mrb[0].mxu0 %v1125
    %v1264 = vpop.f32.mrb[0].mxu0
    %v1265 = vadd.f32 0.0, %v1264
    %v1266 = vpop.f32.mrb[0].mxu0
    %v1267 = vadd.f32 0.0, %v1266
    %1268 = vdwg.mxu0
    %v1269 = vld [vmem:[%s6] sm:$0xf]
    %v1270 = vld [vmem:[%s7] sm:$0xf]
    %v1271 = vsel %vm513, %v1194, 0.0
    %v1272 = vsel %vm513, %v1196, 0.0
    %v1273 = vadd.f32 %v1271, %v1272
    %v1274 = vsel %vm513, %v1265, 0.0
    %v1275 = vadd.f32 %v1273, %v1274
    %v1276 = vsel %vm513, %v1267, 0.0
    %v1277 = vadd.f32 %v1275, %v1276
    %1278 = vadd.xlane.f32.xlu0 %v1277
    %v1279 = vpop.xlane.xlu0 %1278
    %v1280 = vmul.f32 %v1194, %v1194
    %v1281 = vmul.f32 %v1196, %v1196
    %v1282 = vmul.f32 %v1265, %v1265
    %v1283 = vmul.f32 %v1267, %v1267
    %v1284 = vsel %vm513, %v1280, 0.0
    %v1285 = vsel %vm513, %v1281, 0.0
    %v1286 = vadd.f32 %v1284, %v1285
    %v1287 = vsel %vm513, %v1282, 0.0
    %v1288 = vadd.f32 %v1286, %v1287
    %v1289 = vsel %vm513, %v1283, 0.0
    %v1290 = vadd.f32 %v1288, %v1289
    %1291 = vadd.xlane.f32.xlu0 %v1290
    %v1292 = vpop.xlane.xlu0 %1291
    %v1293 = vmul.f32 %v1279, 0.001953125
    %v1294 = vmul.f32 %v1292, 0.001953125
    %v1295 = vmul.f32 %v1293, %v1293
    %v1296 = vsub.f32 %v1294, %v1295
    %v1297 = vsub.f32 %v1194, %v1293
    %v1298 = vsub.f32 %v1196, %v1293
    %v1299 = vsub.f32 %v1265, %v1293
    %v1300 = vsub.f32 %v1267, %v1293
    %v1301 = vadd.f32 %v1296, 1e-05
    %v1302 = vrsqrt.pop %v1301
    %v1303 = vmul.f32 %v1297, %v1302
    %v1304 = vmul.f32 %v1298, %v1302
    %v1305 = vmul.f32 %v1299, %v1302
    %v1306 = vmul.f32 %v1300, %v1302
    %1308 = vset.pattern.permute.xlu0 0
    %1309 = vperm.xlu0 %1308, %v1269
    %v1310 = vpop.permute.xlu0 %1309
    %v1312 = vmul.f32 %v1303, %v1310
    %v1313 = vmul.f32 %v1304, %v1310
    %v1314 = vmul.f32 %v1305, %v1310
    %v1315 = vmul.f32 %v1306, %v1310
    %1317 = vset.pattern.permute.xlu0 0
    %1318 = vperm.xlu0 %1317, %v1270
    %v1319 = vpop.permute.xlu0 %1318
    %v1321 = vadd.f32 %v1312, %v1319
    %v1322 = vadd.f32 %v1313, %v1319
    %v1323 = vadd.f32 %v1314, %v1319
    %v1324 = vadd.f32 %v1315, %v1319
    %v1325 = vadd.f32 %v1321, %v44
    %v1326 = vadd.f32 %v1322, %v48
    %v1327 = vadd.f32 %v1323, %v45
    %v1328 = vadd.f32 %v1324, %v49
    %v1329 = vmax.f32 %v1325, 0.0
    %v1330 = vmax.f32 %v1326, 0.0
    %v1331 = vmax.f32 %v1327, 0.0
    %v1332 = vmax.f32 %v1328, 0.0
    %v1337 = vcombine.low %v1329, %v1330
    %v1338 = vcombine.low %v1331, %v1332
    %1341 = vst [vmem:[#allocation7] sm:$0xff] %v1337
    %1342 = vst [vmem:[#allocation7 + $0x8] sm:$0xff] %v1338
    // Predicated region
    $region38: #{tpu_custom_call.1} parent=1 // pred_check
      _
    $region39: #{tpu_custom_call.1} parent=1 // pred_check_branch
      %1344 = sbr.rel (0) target = $region41
    $region40: #{tpu_custom_call.1} parent=1 // pred_region
      %s1346 = ssub.s32 256, 256
      %1347 = vsyncadd [#allocation6], %s1346
      %s1349 = sshll.u32 [#allocation7], 4
      %s1350 = int_to_ptr.vmem [resolvable:$true] %s1349
      %1352 = dma.vmem_to_hbm [thread:$0]  %s1350, 256, %s8, [#allocation6]
    $region41: #{tpu_custom_call.1} parent=1 // pred_fallthru
      _
    // Predicated region
    $region42: #{tpu_custom_call.1} parent=1 // pred_check
      _
    $region43: #{tpu_custom_call.1} parent=1 // pred_check_branch
      %1354 = sbr.rel (0) target = $region45
    $region44: #{tpu_custom_call.1} parent=1 // pred_region
      %1355 = dma.done [#allocation6], 256
    $region45: #{tpu_custom_call.1} parent=1 // pred_fallthru
      _
    %1356 = vsyncpa [#allocation5], 1
    %1357 = vsyncpa [#allocation6], 1

</llo_original>
